<compile_context>
chip_gen: v6e
topology: v6e:2x2x1
jax: 0.10.0
libtpu: 0.0.40
codegen_flags: <defaults>
</compile_context>

<pallas_src>
import functools

import jax
import jax.numpy as jnp
import numpy as np
from jax.experimental import pallas as pl
from jax.experimental.pallas import tpu as pltpu

CHANNELS = 1
IMG_SIZE = 28
IMG_FEATS = CHANNELS * IMG_SIZE * IMG_SIZE      # 784 (= 49 * 16, bf16-sublane aligned)
HIDDEN = 512
LATENT_DIM = 10
OUT_WIDTH = 128                                 # lane-dense padded head / output width
LEAKY_SLOPE = 0.2
BN_EPS = 1e-5


def _leaky_relu(x):
    # For 0 < slope < 1: max(x, slope*x) == LeakyReLU(x).
    return jnp.maximum(x, LEAKY_SLOPE * x)


def encoder_kernel(x_ref, noise_ref, w1_ref, w2_ref, wh_ref, vecs_ref, out_ref,
                   *, n_valid):
    """Single-grid-point fused encoder forward.

    x_ref:     (Bp, 784)  bf16   flattened image (rows >= n_valid are zero padding)
    noise_ref: (Bp, 10)   f32    N(0,1) draw for reparameterization
    w1_ref:    (784, 512) bf16
    w2_ref:    (512, 512) bf16   (bias dropped: BatchNorm cancels it exactly)
    wh_ref:    (512, 128) bf16   fused heads: cols 0..9 = wmu, 10..19 = wlv, rest 0
    vecs_ref:  (4, 512)   f32    row0=b1, row1=gamma, row2=beta, row3[:128]=head bias
    out_ref:   (Bp, 128)  f32    [ z | mu | logvar | zeros ]
    """
    b1 = vecs_ref[0:1, :]
    gamma = vecs_ref[1:2, :]
    beta = vecs_ref[2:3, :]
    bh = vecs_ref[3:4, 0:OUT_WIDTH]

    # Linear(784 -> 512) + LeakyReLU(0.2): bf16 MXU operands, f32 accumulation.
    h1 = jnp.dot(x_ref[...], w1_ref[...], preferred_element_type=jnp.float32)
    h1 = _leaky_relu(h1 + b1)

    # Linear(512 -> 512).  No bias add: the following train-mode BatchNorm subtracts the
    # batch mean, which cancels any constant bias exactly.
    h2 = jnp.dot(h1.astype(jnp.bfloat16), w2_ref[...],
                 preferred_element_type=jnp.float32)

    # BatchNorm1d(512), training mode (biased 1/N batch stats), f32 throughout.
    # Two-pass variance (square of the centered values) — no E[x^2]-mean^2 cancellation.
    # Padded batch rows are masked out of the statistics.
    inv_n = 1.0 / float(n_valid)
    if n_valid < h2.shape[0]:
        rows = jax.lax.broadcasted_iota(jnp.int32, h2.shape, 0)
        mask = (rows < n_valid).astype(jnp.float32)
        mean = jnp.sum(h2 * mask, axis=0, keepdims=True) * inv_n      # (1, 512)
        centered = h2 - mean
        cm = centered * mask
        var = jnp.sum(cm * cm, axis=0, keepdims=True) * inv_n
    else:
        mean = jnp.sum(h2, axis=0, keepdims=True) * inv_n
        centered = h2 - mean
        var = jnp.sum(centered * centered, axis=0, keepdims=True) * inv_n

    scale = gamma * jax.lax.rsqrt(var + BN_EPS)                        # gamma folded in
    h3 = _leaky_relu(centered * scale + beta)

    # Fused mu/logvar heads: one lane-padded (512, 128) matmul.
    head = jnp.dot(h3.astype(jnp.bfloat16), wh_ref[...],
                   preferred_element_type=jnp.float32)
    head = head + bh                                                   # (Bp, 128)
    mu = head[:, 0:LATENT_DIM]
    logvar = head[:, LATENT_DIM:2 * LATENT_DIM]

    # Reparameterization: z = eps * exp(logvar / 2) + mu   (f32 elementwise, EUP exp)
    z = noise_ref[...] * jnp.exp(logvar * 0.5) + mu

    # Single lane-dense output slab -> one unmasked full-width HBM writeback.
    tail = jnp.zeros((z.shape[0], OUT_WIDTH - 3 * LATENT_DIM), jnp.float32)
    out_ref[...] = jnp.concatenate([z, mu, logvar, tail], axis=-1)


def init_params(key):
    """Natural (PyTorch-default-like) f32 parameters: U[-1/sqrt(fan_in), 1/sqrt(fan_in)]."""
    keys = jax.random.split(key, 10)

    def linear(kw, kb, fan_in, fan_out):
        bound = 1.0 / np.sqrt(fan_in)
        w = jax.random.uniform(kw, (fan_in, fan_out), jnp.float32, -bound, bound)
        b = jax.random.uniform(kb, (1, fan_out), jnp.float32, -bound, bound)
        return w, b

    w1, b1 = linear(keys[0], keys[1], IMG_FEATS, HIDDEN)
    w2, b2 = linear(keys[2], keys[3], HIDDEN, HIDDEN)
    wmu, bmu = linear(keys[4], keys[5], HIDDEN, LATENT_DIM)
    wlv, blv = linear(keys[6], keys[7], HIDDEN, LATENT_DIM)
    gamma = jnp.ones((1, HIDDEN), jnp.float32)
    beta = jnp.zeros((1, HIDDEN), jnp.float32)
    return dict(w1=w1, b1=b1, w2=w2, b2=b2, gamma=gamma, beta=beta,
                wmu=wmu, bmu=bmu, wlv=wlv, blv=blv)


def prepare_params(params):
    """Pack parameters for the kernel: fuse heads, coalesce row vectors, cast weights to bf16.

    b2 is intentionally omitted: train-mode BatchNorm cancels a constant bias exactly.
    """
    wh = jnp.zeros((HIDDEN, OUT_WIDTH), jnp.float32)
    wh = wh.at[:, 0:LATENT_DIM].set(params["wmu"])
    wh = wh.at[:, LATENT_DIM:2 * LATENT_DIM].set(params["wlv"])

    vecs = jnp.zeros((4, HIDDEN), jnp.float32)
    vecs = vecs.at[0, :].set(params["b1"][0])
    vecs = vecs.at[1, :].set(params["gamma"][0])
    vecs = vecs.at[2, :].set(params["beta"][0])
    vecs = vecs.at[3, 0:LATENT_DIM].set(params["bmu"][0])
    vecs = vecs.at[3, LATENT_DIM:2 * LATENT_DIM].set(params["blv"][0])

    return dict(
        w1=params["w1"].astype(jnp.bfloat16),
        w2=params["w2"].astype(jnp.bfloat16),
        wh=wh.astype(jnp.bfloat16),
        vecs=vecs,
    )


def _round_up(x, m):
    return (x + m - 1) // m * m


def _encoder_forward_impl(img_nchw, kparams, noise):
    """img_nchw: (B, 1, 28, 28) f32.  noise: (B, LATENT_DIM) f32 (the N(0,1) draw)."""
    B = img_nchw.shape[0]
    Bp = max(8, _round_up(B, 8))                               # sublane-aligned batch

    x = img_nchw.reshape(B, -1).astype(jnp.bfloat16)           # same as torch .view
    x = jnp.pad(x, ((0, Bp - B), (0, 0)))
    noise_p = jnp.pad(noise.astype(jnp.float32), ((0, Bp - B), (0, 0)))

    kernel = functools.partial(encoder_kernel, n_valid=B)

    # ~1.5 MiB total VMEM footprint (weights + activations) -> default limits are ample;
    # no vmem_limit override, no grid (single grid point).
    out = pl.pallas_call(
        kernel,
        out_shape=jax.ShapeDtypeStruct((Bp, OUT_WIDTH), jnp.float32),
        in_specs=[pl.BlockSpec(memory_space=pltpu.MemorySpace.VMEM)] * 6,
        out_specs=pl.BlockSpec(memory_space=pltpu.MemorySpace.VMEM),
    )(x, noise_p, kparams["w1"], kparams["w2"], kparams["wh"], kparams["vecs"])

    z = out[:B, 0:LATENT_DIM]
    mu = out[:B, LATENT_DIM:2 * LATENT_DIM]
    logvar = out[:B, 2 * LATENT_DIM:3 * LATENT_DIM]
    return z, mu, logvar


# Jit the whole wrapper so the pad/cast/slice ops fuse with the kernel dispatch.
encoder_forward = jax.jit(_encoder_forward_impl)


def reference_forward(img_nchw, params, noise):
    """Pure-JAX reference matching PyTorch semantics (b2 included; same bf16 matmul casts)."""
    B = img_nchw.shape[0]
    x = img_nchw.reshape(B, -1).astype(jnp.float32)

    def mm(a, w):
        return jnp.dot(a.astype(jnp.bfloat16), w.astype(jnp.bfloat16),
                       preferred_element_type=jnp.float32)

    h1 = _leaky_relu(mm(x, params["w1"]) + params["b1"])
    h2 = mm(h1, params["w2"]) + params["b2"]
    mean = jnp.mean(h2, axis=0, keepdims=True)
    var = jnp.mean((h2 - mean) ** 2, axis=0, keepdims=True)
    h3 = (h2 - mean) / jnp.sqrt(var + BN_EPS) * params["gamma"] + params["beta"]
    h3 = _leaky_relu(h3)
    mu = mm(h3, params["wmu"]) + params["bmu"]
    logvar = mm(h3, params["wlv"]) + params["blv"]
    z = noise * jnp.exp(logvar / 2) + mu
    return z, mu, logvar


if __name__ == "__main__":
    B = 4  # BatchNorm1d (training mode) needs batch > 1

    key = jax.random.PRNGKey(0)
    k_img, k_noise, k_params = jax.random.split(key, 3)

    img = jax.random.normal(k_img, (B, CHANNELS, IMG_SIZE, IMG_SIZE), jnp.float32)
    noise = jax.random.normal(k_noise, (B, LATENT_DIM), jnp.float32)  # deterministic N(0,1) draw
    params = init_params(k_params)
    kparams = prepare_params(params)

    z, mu, logvar = encoder_forward(img, kparams, noise)
    jax.block_until_ready((z, mu, logvar))

    z_ref, mu_ref, lv_ref = reference_forward(img, params, noise)
    np.testing.assert_allclose(np.asarray(mu), np.asarray(mu_ref), rtol=5e-3, atol=5e-3)
    np.testing.assert_allclose(np.asarray(logvar), np.asarray(lv_ref), rtol=5e-3, atol=5e-3)
    np.testing.assert_allclose(np.asarray(z), np.asarray(z_ref), rtol=5e-3, atol=5e-3)

    print("KERNEL_OK")
</pallas_src>

<mosaic_0001>
module attributes {stable_mosaic.version = 11 : i64} {
  func.func @encoder_kernel(%arg0: memref<8x784xbf16, #tpu.memory_space<vmem>>, %arg1: memref<8x10xf32, #tpu.memory_space<vmem>>, %arg2: memref<784x512xbf16, #tpu.memory_space<vmem>>, %arg3: memref<512x512xbf16, #tpu.memory_space<vmem>>, %arg4: memref<512x128xbf16, #tpu.memory_space<vmem>>, %arg5: memref<4x512xf32, #tpu.memory_space<vmem>>, %arg6: memref<8x128xf32, #tpu.memory_space<vmem>>) attributes {dimension_semantics = [], scalar_prefetch = 0 : i64, scratch_operands = 0 : i64, tpu.core_type = #tpu.core_type<tc>} {
    %c0 = arith.constant 0 : index
    %c0_0 = arith.constant 0 : index
    %0 = vector.load %arg5[%c0, %c0_0] : memref<4x512xf32, #tpu.memory_space<vmem>>, vector<1x512xf32>
    %c1 = arith.constant 1 : index
    %c0_1 = arith.constant 0 : index
    %1 = vector.load %arg5[%c1, %c0_1] : memref<4x512xf32, #tpu.memory_space<vmem>>, vector<1x512xf32>
    %c2 = arith.constant 2 : index
    %c0_2 = arith.constant 0 : index
    %2 = vector.load %arg5[%c2, %c0_2] : memref<4x512xf32, #tpu.memory_space<vmem>>, vector<1x512xf32>
    %c3 = arith.constant 3 : index
    %c0_3 = arith.constant 0 : index
    %3 = vector.load %arg5[%c3, %c0_3] : memref<4x512xf32, #tpu.memory_space<vmem>>, vector<1x128xf32>
    %c0_4 = arith.constant 0 : index
    %c0_5 = arith.constant 0 : index
    %4 = vector.load %arg0[%c0_4, %c0_5] : memref<8x784xbf16, #tpu.memory_space<vmem>>, vector<8x784xbf16>
    %c0_6 = arith.constant 0 : index
    %c0_7 = arith.constant 0 : index
    %5 = vector.load %arg2[%c0_6, %c0_7] : memref<784x512xbf16, #tpu.memory_space<vmem>>, vector<784x512xbf16>
    %cst = arith.constant dense<0.000000e+00> : vector<8x512xf32>
    %6 = tpu.matmul %4, %5, %cst {dimension_numbers = #tpu.dot_dimension_numbers<[1], [0], [0], [1], [0, 0, 1, 1], [], []>} : vector<8x784xbf16>, vector<784x512xbf16>, vector<8x512xf32> -> vector<8x512xf32>
    %7 = vector.broadcast %0 : vector<1x512xf32> to vector<8x512xf32>
    %8 = arith.addf %6, %7 : vector<8x512xf32>
    %cst_8 = arith.constant 2.000000e-01 : f32
    %9 = vector.broadcast %cst_8 : f32 to vector<8x512xf32>
    %10 = arith.mulf %9, %8 : vector<8x512xf32>
    %11 = arith.maximumf %8, %10 : vector<8x512xf32>
    %12 = arith.truncf %11 : vector<8x512xf32> to vector<8x512xbf16>
    %c0_9 = arith.constant 0 : index
    %c0_10 = arith.constant 0 : index
    %13 = vector.load %arg3[%c0_9, %c0_10] : memref<512x512xbf16, #tpu.memory_space<vmem>>, vector<512x512xbf16>
    %cst_11 = arith.constant dense<0.000000e+00> : vector<8x512xf32>
    %14 = tpu.matmul %12, %13, %cst_11 {dimension_numbers = #tpu.dot_dimension_numbers<[1], [0], [0], [1], [0, 0, 1, 1], [], []>} : vector<8x512xbf16>, vector<512x512xbf16>, vector<8x512xf32> -> vector<8x512xf32>
    %15 = tpu.iota {dimensions = array<i32: 0>} : vector<8x512xi32>
    %c4_i32 = arith.constant 4 : i32
    %16 = vector.broadcast %c4_i32 : i32 to vector<8x512xi32>
    %17 = arith.cmpi slt, %15, %16 : vector<8x512xi32>
    %18 = arith.extui %17 : vector<8x512xi1> to vector<8x512xi32>
    %19 = arith.sitofp %18 : vector<8x512xi32> to vector<8x512xf32>
    %20 = arith.mulf %14, %19 : vector<8x512xf32>
    %cst_12 = arith.constant dense<0.000000e+00> : vector<512xf32>
    %21 = vector.multi_reduction <add>, %20, %cst_12 [0] : vector<8x512xf32> to vector<512xf32>
    %22 = vector.shape_cast %21 : vector<512xf32> to vector<1x512xf32>
    %cst_13 = arith.constant 2.500000e-01 : f32
    %23 = vector.broadcast %cst_13 : f32 to vector<1x512xf32>
    %24 = arith.mulf %22, %23 : vector<1x512xf32>
    %25 = vector.broadcast %24 : vector<1x512xf32> to vector<8x512xf32>
    %26 = arith.subf %14, %25 : vector<8x512xf32>
    %27 = arith.mulf %26, %19 : vector<8x512xf32>
    %28 = arith.mulf %27, %27 : vector<8x512xf32>
    %cst_14 = arith.constant dense<0.000000e+00> : vector<512xf32>
    %29 = vector.multi_reduction <add>, %28, %cst_14 [0] : vector<8x512xf32> to vector<512xf32>
    %30 = vector.shape_cast %29 : vector<512xf32> to vector<1x512xf32>
    %cst_15 = arith.constant 2.500000e-01 : f32
    %31 = vector.broadcast %cst_15 : f32 to vector<1x512xf32>
    %32 = arith.mulf %30, %31 : vector<1x512xf32>
    %cst_16 = arith.constant 9.99999974E-6 : f32
    %33 = vector.broadcast %cst_16 : f32 to vector<1x512xf32>
    %34 = arith.addf %32, %33 : vector<1x512xf32>
    %35 = math.rsqrt %34 : vector<1x512xf32>
    %36 = arith.mulf %1, %35 : vector<1x512xf32>
    %37 = vector.broadcast %36 : vector<1x512xf32> to vector<8x512xf32>
    %38 = arith.mulf %26, %37 : vector<8x512xf32>
    %39 = vector.broadcast %2 : vector<1x512xf32> to vector<8x512xf32>
    %40 = arith.addf %38, %39 : vector<8x512xf32>
    %cst_17 = arith.constant 2.000000e-01 : f32
    %41 = vector.broadcast %cst_17 : f32 to vector<8x512xf32>
    %42 = arith.mulf %41, %40 : vector<8x512xf32>
    %43 = arith.maximumf %40, %42 : vector<8x512xf32>
    %44 = arith.truncf %43 : vector<8x512xf32> to vector<8x512xbf16>
    %c0_18 = arith.constant 0 : index
    %c0_19 = arith.constant 0 : index
    %45 = vector.load %arg4[%c0_18, %c0_19] : memref<512x128xbf16, #tpu.memory_space<vmem>>, vector<512x128xbf16>
    %cst_20 = arith.constant dense<0.000000e+00> : vector<8x128xf32>
    %46 = tpu.matmul %44, %45, %cst_20 {dimension_numbers = #tpu.dot_dimension_numbers<[1], [0], [0], [1], [0, 0, 1, 1], [], []>} : vector<8x512xbf16>, vector<512x128xbf16>, vector<8x128xf32> -> vector<8x128xf32>
    %47 = vector.broadcast %3 : vector<1x128xf32> to vector<8x128xf32>
    %48 = arith.addf %46, %47 : vector<8x128xf32>
    %49 = vector.extract_strided_slice %48 {offsets = [0, 0], sizes = [8, 10], strides = [1, 1]} : vector<8x128xf32> to vector<8x10xf32>
    %50 = vector.extract_strided_slice %48 {offsets = [0, 10], sizes = [8, 10], strides = [1, 1]} : vector<8x128xf32> to vector<8x10xf32>
    %c0_21 = arith.constant 0 : index
    %c0_22 = arith.constant 0 : index
    %51 = vector.load %arg1[%c0_21, %c0_22] : memref<8x10xf32, #tpu.memory_space<vmem>>, vector<8x10xf32>
    %cst_23 = arith.constant 5.000000e-01 : f32
    %52 = vector.broadcast %cst_23 : f32 to vector<8x10xf32>
    %53 = arith.mulf %50, %52 : vector<8x10xf32>
    %54 = math.exp %53 : vector<8x10xf32>
    %55 = arith.mulf %51, %54 : vector<8x10xf32>
    %56 = arith.addf %55, %49 : vector<8x10xf32>
    %cst_24 = arith.constant 0.000000e+00 : f32
    %57 = vector.broadcast %cst_24 : f32 to vector<8x98xf32>
    %58 = tpu.concatenate %56, %49, %50, %57 in 1 : vector<8x10xf32>, vector<8x10xf32>, vector<8x10xf32>, vector<8x98xf32> -> vector<8x128xf32>
    %c0_25 = arith.constant 0 : index
    %c0_26 = arith.constant 0 : index
    %59 = vector.load %arg6[%c0_25, %c0_26] : memref<8x128xf32, #tpu.memory_space<vmem>>, vector<8x128xf32>
    tpu.vector_store %arg6[%c0_25, %c0_26], %58 {strides = array<i32>} : memref<8x128xf32, #tpu.memory_space<vmem>>, vector<8x128xf32>,
    return
  }
}

</mosaic_0001>

<llo_original>
// kernel: _encoder_forward_impl.1
$region0: #{_encoder_forward_impl.1}
  #allocation0 [shape = 'u32[]', space=smem, size = 0x4, offset = 0x4, fixed_abs, tag = 'smem constant byte address 0x4 - core index']
  #allocation1 [shape = 'u32[144,128]{1,0:T(1,128)}', space=vmem, size = 0x12000, scoped, tag = 'internal scratch']
  %s0 = inlined_call_operand.vmem [shape: bf16[8,784], index: 0, kind: input, shape index: {}]
  %s1 = inlined_call_operand.vmem [shape: f32[8,10], index: 1, kind: input, shape index: {}]
  %s2 = inlined_call_operand.hbm [shape: bf16[784,512], index: 2, kind: input, shape index: {}]
  %s3 = inlined_call_operand.hbm [shape: bf16[512,512], index: 3, kind: input, shape index: {}]
  %s4 = inlined_call_operand.vmem [shape: bf16[512,128], index: 4, kind: input, shape index: {}]
  %s5 = inlined_call_operand.vmem [shape: f32[4,512], index: 5, kind: input, shape index: {}]
  %s6 = inlined_call_operand.vmem [shape: f32[8,128], index: 6, kind: output, shape index: {}]
  %s7 = sld [smem:[#allocation0]]
  $region42: #{_encoder_forward_impl.1} parent=0
    _
  %s9 = ssub.s32 1, %s7
  %s10 = scalar_select 0, %s9, %s7
  $region1: #{_encoder_forward_impl.1} parent=0
    #allocation2 [shape = 'u8[802816]{0}', space=vmem, size = 0xc4000, scoped, tag = 'input window, operand 2, single buffered']
    #allocation3 [shape = 's32[1]{0}', space=sflag, size = 0x4, scoped, tag = 'scoped memory for _encoder_forward_impl.1']
    #allocation4 [shape = 'u8[524288]{0}', space=vmem, size = 0x80000, scoped, tag = 'input window, operand 3, single buffered']
    #allocation5 [shape = 's32[1]{0}', space=sflag, size = 0x4, scoped, tag = 'scoped memory for _encoder_forward_impl.1']
    %11 = vsyncpa [#allocation3], 0
    %12 = vsyncpa [#allocation5], 0
    // Predicated region
    $region2: #{_encoder_forward_impl.1} parent=1 // pred_check
      _
    $region3: #{_encoder_forward_impl.1} parent=1 // pred_check_branch
      %14 = sbr.rel (0) target = $region5
    $region4: #{_encoder_forward_impl.1} parent=1 // pred_region
      _
    $region5: #{_encoder_forward_impl.1} parent=1 // pred_fallthru
      _
    // Predicated region
    $region6: #{_encoder_forward_impl.1} parent=1 // pred_check
      _
    $region7: #{_encoder_forward_impl.1} parent=1 // pred_check_branch
      %16 = sbr.rel (0) target = $region9
    $region8: #{_encoder_forward_impl.1} parent=1 // pred_region
      _
    $region9: #{_encoder_forward_impl.1} parent=1 // pred_fallthru
      _
    // Predicated region
    $region10: #{_encoder_forward_impl.1} parent=1 // pred_check
      _
    $region11: #{_encoder_forward_impl.1} parent=1 // pred_check_branch
      %18 = sbr.rel (0) target = $region13
    $region12: #{_encoder_forward_impl.1} parent=1 // pred_region
      %s20 = ssub.s32 25088, 25088
      %21 = vsyncadd [#allocation3], %s20
      %s22 = sshll.u32 [#allocation2], 4
      %s23 = int_to_ptr.vmem [resolvable:$true] %s22
      %28 = dma.hbm_to_vmem [thread:$0]  %s2, 25088, %s23, [#allocation3], 256, 256, 16
    $region13: #{_encoder_forward_impl.1} parent=1 // pred_fallthru
      _
    // Predicated region
    $region14: #{_encoder_forward_impl.1} parent=1 // pred_check
      _
    $region15: #{_encoder_forward_impl.1} parent=1 // pred_check_branch
      %30 = sbr.rel (0) target = $region17
    $region16: #{_encoder_forward_impl.1} parent=1 // pred_region
      %s32 = ssub.s32 16384, 16384
      %33 = vsyncadd [#allocation5], %s32
      %s34 = sshll.u32 [#allocation4], 4
      %s35 = int_to_ptr.vmem [resolvable:$true] %s34
      %40 = dma.hbm_to_vmem [thread:$0]  %s3, 16384, %s35, [#allocation5], 256, 256, 16
    $region17: #{_encoder_forward_impl.1} parent=1 // pred_fallthru
      _
    // Predicated region
    $region18: #{_encoder_forward_impl.1} parent=1 // pred_check
      _
    $region19: #{_encoder_forward_impl.1} parent=1 // pred_check_branch
      %42 = sbr.rel (0) target = $region21
    $region20: #{_encoder_forward_impl.1} parent=1 // pred_region
      _
    $region21: #{_encoder_forward_impl.1} parent=1 // pred_fallthru
      _
    // Predicated region
    $region22: #{_encoder_forward_impl.1} parent=1 // pred_check
      _
    $region23: #{_encoder_forward_impl.1} parent=1 // pred_check_branch
      %44 = sbr.rel (0) target = $region25
    $region24: #{_encoder_forward_impl.1} parent=1 // pred_region
      _
    $region25: #{_encoder_forward_impl.1} parent=1 // pred_fallthru
      _
    // Predicated region
    $region26: #{_encoder_forward_impl.1} parent=1 // pred_check
      _
    $region27: #{_encoder_forward_impl.1} parent=1 // pred_check_branch
      %46 = sbr.rel (0) target = $region29
    $region28: #{_encoder_forward_impl.1} parent=1 // pred_region
      %47 = dma.done [#allocation3], 25088
    $region29: #{_encoder_forward_impl.1} parent=1 // pred_fallthru
      _
    // Predicated region
    $region30: #{_encoder_forward_impl.1} parent=1 // pred_check
      _
    $region31: #{_encoder_forward_impl.1} parent=1 // pred_check_branch
      %49 = sbr.rel (0) target = $region33
    $region32: #{_encoder_forward_impl.1} parent=1 // pred_region
      %50 = dma.done [#allocation5], 16384
    $region33: #{_encoder_forward_impl.1} parent=1 // pred_fallthru
      _
    %v52 = vld [vmem:[%s5] ss:$4 sm:$0xf]
    %s53 = scalar_lea.vmem %s5, 1
    %v54 = vld [vmem:[%s53] ss:$4 sm:$0xf]
    %s55 = scalar_lea.vmem %s5, 2
    %v56 = vld [vmem:[%s55] ss:$4 sm:$0xf]
    %v57 = vld [vmem:[%s5 + $0x3] sm:$0x1]
    %v58 = vld [vmem:[%s0] sm:$0xff]
    %v59 = vld [vmem:[%s0 + $0x8] sm:$0xff]
    %v60 = vld [vmem:[%s0 + $0x10] sm:$0xff]
    %v61 = vld [vmem:[%s0 + $0x18] sm:$0xf]
    %v62 = vld [vmem:[#allocation2] sm:$0xff]
    %v63 = vld [vmem:[#allocation2 + $0x8] sm:$0xff]
    %v64 = vld [vmem:[#allocation2 + $0x10] sm:$0xff]
    %v65 = vld [vmem:[#allocation2 + $0x18] sm:$0xff]
    %v66 = vld [vmem:[#allocation2 + $0x20] sm:$0xff]
    %v67 = vld [vmem:[#allocation2 + $0x28] sm:$0xff]
    %v68 = vld [vmem:[#allocation2 + $0x30] sm:$0xff]
    %v69 = vld [vmem:[#allocation2 + $0x38] sm:$0xff]
    %v70 = vld [vmem:[#allocation2 + $0x40] sm:$0xff]
    %v71 = vld [vmem:[#allocation2 + $0x48] sm:$0xff]
    %v72 = vld [vmem:[#allocation2 + $0x50] sm:$0xff]
    %v73 = vld [vmem:[#allocation2 + $0x58] sm:$0xff]
    %v74 = vld [vmem:[#allocation2 + $0x60] sm:$0xff]
    %v75 = vld [vmem:[#allocation2 + $0x68] sm:$0xff]
    %v76 = vld [vmem:[#allocation2 + $0x70] sm:$0xff]
    %v77 = vld [vmem:[#allocation2 + $0x78] sm:$0xff]
    %v78 = vld [vmem:[#allocation2 + $0x80] sm:$0xff]
    %v79 = vld [vmem:[#allocation2 + $0x88] sm:$0xff]
    %v80 = vld [vmem:[#allocation2 + $0x90] sm:$0xff]
    %v81 = vld [vmem:[#allocation2 + $0x98] sm:$0xff]
    %v82 = vld [vmem:[#allocation2 + $0xa0] sm:$0xff]
    %v83 = vld [vmem:[#allocation2 + $0xa8] sm:$0xff]
    %v84 = vld [vmem:[#allocation2 + $0xb0] sm:$0xff]
    %v85 = vld [vmem:[#allocation2 + $0xb8] sm:$0xff]
    %v86 = vld [vmem:[#allocation2 + $0xc0] sm:$0xff]
    %v87 = vld [vmem:[#allocation2 + $0xc8] sm:$0xff]
    %v88 = vld [vmem:[#allocation2 + $0xd0] sm:$0xff]
    %v89 = vld [vmem:[#allocation2 + $0xd8] sm:$0xff]
    %v90 = vld [vmem:[#allocation2 + $0xe0] sm:$0xff]
    %v91 = vld [vmem:[#allocation2 + $0xe8] sm:$0xff]
    %v92 = vld [vmem:[#allocation2 + $0xf0] sm:$0xff]
    %v93 = vld [vmem:[#allocation2 + $0xf8] sm:$0xff]
    %v94 = vld [vmem:[#allocation2 + $0x100] sm:$0xff]
    %v95 = vld [vmem:[#allocation2 + $0x108] sm:$0xff]
    %v96 = vld [vmem:[#allocation2 + $0x110] sm:$0xff]
    %v97 = vld [vmem:[#allocation2 + $0x118] sm:$0xff]
    %v98 = vld [vmem:[#allocation2 + $0x120] sm:$0xff]
    %v99 = vld [vmem:[#allocation2 + $0x128] sm:$0xff]
    %v100 = vld [vmem:[#allocation2 + $0x130] sm:$0xff]
    %v101 = vld [vmem:[#allocation2 + $0x138] sm:$0xff]
    %v102 = vld [vmem:[#allocation2 + $0x140] sm:$0xff]
    %v103 = vld [vmem:[#allocation2 + $0x148] sm:$0xff]
    %v104 = vld [vmem:[#allocation2 + $0x150] sm:$0xff]
    %v105 = vld [vmem:[#allocation2 + $0x158] sm:$0xff]
    %v106 = vld [vmem:[#allocation2 + $0x160] sm:$0xff]
    %v107 = vld [vmem:[#allocation2 + $0x168] sm:$0xff]
    %v108 = vld [vmem:[#allocation2 + $0x170] sm:$0xff]
    %v109 = vld [vmem:[#allocation2 + $0x178] sm:$0xff]
    %v110 = vld [vmem:[#allocation2 + $0x180] sm:$0xff]
    %v111 = vld [vmem:[#allocation2 + $0x188] sm:$0xff]
    %v112 = vld [vmem:[#allocation2 + $0x190] sm:$0xff]
    %v113 = vld [vmem:[#allocation2 + $0x198] sm:$0xff]
    %v114 = vld [vmem:[#allocation2 + $0x1a0] sm:$0xff]
    %v115 = vld [vmem:[#allocation2 + $0x1a8] sm:$0xff]
    %v116 = vld [vmem:[#allocation2 + $0x1b0] sm:$0xff]
    %v117 = vld [vmem:[#allocation2 + $0x1b8] sm:$0xff]
    %v118 = vld [vmem:[#allocation2 + $0x1c0] sm:$0xff]
    %v119 = vld [vmem:[#allocation2 + $0x1c8] sm:$0xff]
    %v120 = vld [vmem:[#allocation2 + $0x1d0] sm:$0xff]
    %v121 = vld [vmem:[#allocation2 + $0x1d8] sm:$0xff]
    %v122 = vld [vmem:[#allocation2 + $0x1e0] sm:$0xff]
    %v123 = vld [vmem:[#allocation2 + $0x1e8] sm:$0xff]
    %v124 = vld [vmem:[#allocation2 + $0x1f0] sm:$0xff]
    %v125 = vld [vmem:[#allocation2 + $0x1f8] sm:$0xff]
    %v126 = vld [vmem:[#allocation2 + $0x200] sm:$0xff]
    %v127 = vld [vmem:[#allocation2 + $0x208] sm:$0xff]
    %v128 = vld [vmem:[#allocation2 + $0x210] sm:$0xff]
    %v129 = vld [vmem:[#allocation2 + $0x218] sm:$0xff]
    %v130 = vld [vmem:[#allocation2 + $0x220] sm:$0xff]
    %v131 = vld [vmem:[#allocation2 + $0x228] sm:$0xff]
    %v132 = vld [vmem:[#allocation2 + $0x230] sm:$0xff]
    %v133 = vld [vmem:[#allocation2 + $0x238] sm:$0xff]
    %v134 = vld [vmem:[#allocation2 + $0x240] sm:$0xff]
    %v135 = vld [vmem:[#allocation2 + $0x248] sm:$0xff]
    %v136 = vld [vmem:[#allocation2 + $0x250] sm:$0xff]
    %v137 = vld [vmem:[#allocation2 + $0x258] sm:$0xff]
    %v138 = vld [vmem:[#allocation2 + $0x260] sm:$0xff]
    %v139 = vld [vmem:[#allocation2 + $0x268] sm:$0xff]
    %v140 = vld [vmem:[#allocation2 + $0x270] sm:$0xff]
    %v141 = vld [vmem:[#allocation2 + $0x278] sm:$0xff]
    %v142 = vld [vmem:[#allocation2 + $0x280] sm:$0xff]
    %v143 = vld [vmem:[#allocation2 + $0x288] sm:$0xff]
    %v144 = vld [vmem:[#allocation2 + $0x290] sm:$0xff]
    %v145 = vld [vmem:[#allocation2 + $0x298] sm:$0xff]
    %v146 = vld [vmem:[#allocation2 + $0x2a0] sm:$0xff]
    %v147 = vld [vmem:[#allocation2 + $0x2a8] sm:$0xff]
    %v148 = vld [vmem:[#allocation2 + $0x2b0] sm:$0xff]
    %v149 = vld [vmem:[#allocation2 + $0x2b8] sm:$0xff]
    %v150 = vld [vmem:[#allocation2 + $0x2c0] sm:$0xff]
    %v151 = vld [vmem:[#allocation2 + $0x2c8] sm:$0xff]
    %v152 = vld [vmem:[#allocation2 + $0x2d0] sm:$0xff]
    %v153 = vld [vmem:[#allocation2 + $0x2d8] sm:$0xff]
    %v154 = vld [vmem:[#allocation2 + $0x2e0] sm:$0xff]
    %v155 = vld [vmem:[#allocation2 + $0x2e8] sm:$0xff]
    %v156 = vld [vmem:[#allocation2 + $0x2f0] sm:$0xff]
    %v157 = vld [vmem:[#allocation2 + $0x2f8] sm:$0xff]
    %v158 = vld [vmem:[#allocation2 + $0x300] sm:$0xff]
    %v159 = vld [vmem:[#allocation2 + $0x308] sm:$0xff]
    %v160 = vld [vmem:[#allocation2 + $0x310] sm:$0xff]
    %v161 = vld [vmem:[#allocation2 + $0x318] sm:$0xff]
    %v162 = vld [vmem:[#allocation2 + $0x320] sm:$0xff]
    %v163 = vld [vmem:[#allocation2 + $0x328] sm:$0xff]
    %v164 = vld [vmem:[#allocation2 + $0x330] sm:$0xff]
    %v165 = vld [vmem:[#allocation2 + $0x338] sm:$0xff]
    %v166 = vld [vmem:[#allocation2 + $0x340] sm:$0xff]
    %v167 = vld [vmem:[#allocation2 + $0x348] sm:$0xff]
    %v168 = vld [vmem:[#allocation2 + $0x350] sm:$0xff]
    %v169 = vld [vmem:[#allocation2 + $0x358] sm:$0xff]
    %v170 = vld [vmem:[#allocation2 + $0x360] sm:$0xff]
    %v171 = vld [vmem:[#allocation2 + $0x368] sm:$0xff]
    %v172 = vld [vmem:[#allocation2 + $0x370] sm:$0xff]
    %v173 = vld [vmem:[#allocation2 + $0x378] sm:$0xff]
    %v174 = vld [vmem:[#allocation2 + $0x380] sm:$0xff]
    %v175 = vld [vmem:[#allocation2 + $0x388] sm:$0xff]
    %v176 = vld [vmem:[#allocation2 + $0x390] sm:$0xff]
    %v177 = vld [vmem:[#allocation2 + $0x398] sm:$0xff]
    %v178 = vld [vmem:[#allocation2 + $0x3a0] sm:$0xff]
    %v179 = vld [vmem:[#allocation2 + $0x3a8] sm:$0xff]
    %v180 = vld [vmem:[#allocation2 + $0x3b0] sm:$0xff]
    %v181 = vld [vmem:[#allocation2 + $0x3b8] sm:$0xff]
    %v182 = vld [vmem:[#allocation2 + $0x3c0] sm:$0xff]
    %v183 = vld [vmem:[#allocation2 + $0x3c8] sm:$0xff]
    %v184 = vld [vmem:[#allocation2 + $0x3d0] sm:$0xff]
    %v185 = vld [vmem:[#allocation2 + $0x3d8] sm:$0xff]
    %v186 = vld [vmem:[#allocation2 + $0x3e0] sm:$0xff]
    %v187 = vld [vmem:[#allocation2 + $0x3e8] sm:$0xff]
    %v188 = vld [vmem:[#allocation2 + $0x3f0] sm:$0xff]
    %v189 = vld [vmem:[#allocation2 + $0x3f8] sm:$0xff]
    %v190 = vld [vmem:[#allocation2 + $0x400] sm:$0xff]
    %v191 = vld [vmem:[#allocation2 + $0x408] sm:$0xff]
    %v192 = vld [vmem:[#allocation2 + $0x410] sm:$0xff]
    %v193 = vld [vmem:[#allocation2 + $0x418] sm:$0xff]
    %v194 = vld [vmem:[#allocation2 + $0x420] sm:$0xff]
    %v195 = vld [vmem:[#allocation2 + $0x428] sm:$0xff]
    %v196 = vld [vmem:[#allocation2 + $0x430] sm:$0xff]
    %v197 = vld [vmem:[#allocation2 + $0x438] sm:$0xff]
    %v198 = vld [vmem:[#allocation2 + $0x440] sm:$0xff]
    %v199 = vld [vmem:[#allocation2 + $0x448] sm:$0xff]
    %v200 = vld [vmem:[#allocation2 + $0x450] sm:$0xff]
    %v201 = vld [vmem:[#allocation2 + $0x458] sm:$0xff]
    %v202 = vld [vmem:[#allocation2 + $0x460] sm:$0xff]
    %v203 = vld [vmem:[#allocation2 + $0x468] sm:$0xff]
    %v204 = vld [vmem:[#allocation2 + $0x470] sm:$0xff]
    %v205 = vld [vmem:[#allocation2 + $0x478] sm:$0xff]
    %v206 = vld [vmem:[#allocation2 + $0x480] sm:$0xff]
    %v207 = vld [vmem:[#allocation2 + $0x488] sm:$0xff]
    %v208 = vld [vmem:[#allocation2 + $0x490] sm:$0xff]
    %v209 = vld [vmem:[#allocation2 + $0x498] sm:$0xff]
    %v210 = vld [vmem:[#allocation2 + $0x4a0] sm:$0xff]
    %v211 = vld [vmem:[#allocation2 + $0x4a8] sm:$0xff]
    %v212 = vld [vmem:[#allocation2 + $0x4b0] sm:$0xff]
    %v213 = vld [vmem:[#allocation2 + $0x4b8] sm:$0xff]
    %v214 = vld [vmem:[#allocation2 + $0x4c0] sm:$0xff]
    %v215 = vld [vmem:[#allocation2 + $0x4c8] sm:$0xff]
    %v216 = vld [vmem:[#allocation2 + $0x4d0] sm:$0xff]
    %v217 = vld [vmem:[#allocation2 + $0x4d8] sm:$0xff]
    %v218 = vld [vmem:[#allocation2 + $0x4e0] sm:$0xff]
    %v219 = vld [vmem:[#allocation2 + $0x4e8] sm:$0xff]
    %v220 = vld [vmem:[#allocation2 + $0x4f0] sm:$0xff]
    %v221 = vld [vmem:[#allocation2 + $0x4f8] sm:$0xff]
    %v222 = vld [vmem:[#allocation2 + $0x500] sm:$0xff]
    %v223 = vld [vmem:[#allocation2 + $0x508] sm:$0xff]
    %v224 = vld [vmem:[#allocation2 + $0x510] sm:$0xff]
    %v225 = vld [vmem:[#allocation2 + $0x518] sm:$0xff]
    %v226 = vld [vmem:[#allocation2 + $0x520] sm:$0xff]
    %v227 = vld [vmem:[#allocation2 + $0x528] sm:$0xff]
    %v228 = vld [vmem:[#allocation2 + $0x530] sm:$0xff]
    %v229 = vld [vmem:[#allocation2 + $0x538] sm:$0xff]
    %v230 = vld [vmem:[#allocation2 + $0x540] sm:$0xff]
    %v231 = vld [vmem:[#allocation2 + $0x548] sm:$0xff]
    %v232 = vld [vmem:[#allocation2 + $0x550] sm:$0xff]
    %v233 = vld [vmem:[#allocation2 + $0x558] sm:$0xff]
    %v234 = vld [vmem:[#allocation2 + $0x560] sm:$0xff]
    %v235 = vld [vmem:[#allocation2 + $0x568] sm:$0xff]
    %v236 = vld [vmem:[#allocation2 + $0x570] sm:$0xff]
    %v237 = vld [vmem:[#allocation2 + $0x578] sm:$0xff]
    %v238 = vld [vmem:[#allocation2 + $0x580] sm:$0xff]
    %v239 = vld [vmem:[#allocation2 + $0x588] sm:$0xff]
    %v240 = vld [vmem:[#allocation2 + $0x590] sm:$0xff]
    %v241 = vld [vmem:[#allocation2 + $0x598] sm:$0xff]
    %v242 = vld [vmem:[#allocation2 + $0x5a0] sm:$0xff]
    %v243 = vld [vmem:[#allocation2 + $0x5a8] sm:$0xff]
    %v244 = vld [vmem:[#allocation2 + $0x5b0] sm:$0xff]
    %v245 = vld [vmem:[#allocation2 + $0x5b8] sm:$0xff]
    %v246 = vld [vmem:[#allocation2 + $0x5c0] sm:$0xff]
    %v247 = vld [vmem:[#allocation2 + $0x5c8] sm:$0xff]
    %v248 = vld [vmem:[#allocation2 + $0x5d0] sm:$0xff]
    %v249 = vld [vmem:[#allocation2 + $0x5d8] sm:$0xff]
    %v250 = vld [vmem:[#allocation2 + $0x5e0] sm:$0xff]
    %v251 = vld [vmem:[#allocation2 + $0x5e8] sm:$0xff]
    %v252 = vld [vmem:[#allocation2 + $0x5f0] sm:$0xff]
    %v253 = vld [vmem:[#allocation2 + $0x5f8] sm:$0xff]
    %v254 = vld [vmem:[#allocation2 + $0x600] sm:$0xff]
    %v255 = vld [vmem:[#allocation2 + $0x608] sm:$0xff]
    %v256 = vld [vmem:[#allocation2 + $0x610] sm:$0xff]
    %v257 = vld [vmem:[#allocation2 + $0x618] sm:$0xff]
    %v259 = vlaneseq
    %v260 = vshrl.u32 %v259, 7
    %v261 = vsub.s32 0, %v260
    %v262 = vrot.slane %v52, %v261
    %v263 = vlaneseq
    %v264 = vshrl.u32 %v263, 7
    %v265 = vsub.s32 1, %v264
    %v266 = vrot.slane %v52, %v265
    %v267 = vlaneseq
    %v268 = vshrl.u32 %v267, 7
    %v269 = vsub.s32 2, %v268
    %v270 = vrot.slane %v52, %v269
    %v271 = vlaneseq
    %v272 = vshrl.u32 %v271, 7
    %v273 = vsub.s32 3, %v272
    %v274 = vrot.slane %v52, %v273
    %v283 = vunpack.c.l.b16 %v58
    %v284 = vunpack.c.h.b16 %v58
    %v285 = vunpack.c.l.b16 %v59
    %v286 = vunpack.c.h.b16 %v59
    %v287 = vunpack.c.l.b16 %v60
    %v288 = vunpack.c.h.b16 %v60
    %v289 = vunpack.c.l.b16 %v61
    %v290 = vpack.c.b16 %v283, %v283
    %v291 = vpack.c.b16 %v284, %v284
    %v292 = vpack.c.b16 %v285, %v285
    %v293 = vpack.c.b16 %v286, %v286
    %v294 = vpack.c.b16 %v287, %v287
    %v295 = vpack.c.b16 %v288, %v288
    %v296 = vpack.c.b16 %v289, %v289
    %v499 = vunpack.c.l.b16 %v62
    %v500 = vunpack.c.h.b16 %v62
    %v501 = vunpack.c.l.b16 %v63
    %v502 = vunpack.c.h.b16 %v63
    %v503 = vunpack.c.l.b16 %v64
    %v504 = vunpack.c.h.b16 %v64
    %v505 = vunpack.c.l.b16 %v65
    %v506 = vunpack.c.h.b16 %v65
    %v507 = vunpack.c.l.b16 %v66
    %v508 = vunpack.c.h.b16 %v66
    %v509 = vunpack.c.l.b16 %v67
    %v510 = vunpack.c.h.b16 %v67
    %v511 = vunpack.c.l.b16 %v68
    %v512 = vunpack.c.h.b16 %v68
    %v513 = vunpack.c.l.b16 %v69
    %v514 = vunpack.c.h.b16 %v69
    %v515 = vunpack.c.l.b16 %v70
    %v516 = vunpack.c.h.b16 %v70
    %v517 = vunpack.c.l.b16 %v71
    %v518 = vunpack.c.h.b16 %v71
    %v519 = vunpack.c.l.b16 %v72
    %v520 = vunpack.c.h.b16 %v72
    %v521 = vunpack.c.l.b16 %v73
    %v522 = vunpack.c.h.b16 %v73
    %v523 = vunpack.c.l.b16 %v74
    %v524 = vunpack.c.h.b16 %v74
    %v525 = vunpack.c.l.b16 %v75
    %v526 = vunpack.c.h.b16 %v75
    %v527 = vunpack.c.l.b16 %v76
    %v528 = vunpack.c.h.b16 %v76
    %v529 = vunpack.c.l.b16 %v77
    %v530 = vunpack.c.h.b16 %v77
    %v531 = vunpack.c.l.b16 %v78
    %v532 = vunpack.c.h.b16 %v78
    %v533 = vunpack.c.l.b16 %v79
    %v534 = vunpack.c.h.b16 %v79
    %v535 = vunpack.c.l.b16 %v80
    %v536 = vunpack.c.h.b16 %v80
    %v537 = vunpack.c.l.b16 %v81
    %v538 = vunpack.c.h.b16 %v81
    %v539 = vunpack.c.l.b16 %v82
    %v540 = vunpack.c.h.b16 %v82
    %v541 = vunpack.c.l.b16 %v83
    %v542 = vunpack.c.h.b16 %v83
    %v543 = vunpack.c.l.b16 %v84
    %v544 = vunpack.c.h.b16 %v84
    %v545 = vunpack.c.l.b16 %v85
    %v546 = vunpack.c.h.b16 %v85
    %v547 = vunpack.c.l.b16 %v86
    %v548 = vunpack.c.h.b16 %v86
    %v549 = vunpack.c.l.b16 %v87
    %v550 = vunpack.c.h.b16 %v87
    %v551 = vunpack.c.l.b16 %v88
    %v552 = vunpack.c.h.b16 %v88
    %v553 = vunpack.c.l.b16 %v89
    %v554 = vunpack.c.h.b16 %v89
    %v555 = vunpack.c.l.b16 %v90
    %v556 = vunpack.c.h.b16 %v90
    %v557 = vunpack.c.l.b16 %v91
    %v558 = vunpack.c.h.b16 %v91
    %v559 = vunpack.c.l.b16 %v92
    %v560 = vunpack.c.h.b16 %v92
    %v561 = vunpack.c.l.b16 %v93
    %v562 = vunpack.c.h.b16 %v93
    %v563 = vunpack.c.l.b16 %v94
    %v564 = vunpack.c.h.b16 %v94
    %v565 = vunpack.c.l.b16 %v95
    %v566 = vunpack.c.h.b16 %v95
    %v567 = vunpack.c.l.b16 %v96
    %v568 = vunpack.c.h.b16 %v96
    %v569 = vunpack.c.l.b16 %v97
    %v570 = vunpack.c.h.b16 %v97
    %v571 = vunpack.c.l.b16 %v98
    %v572 = vunpack.c.h.b16 %v98
    %v573 = vunpack.c.l.b16 %v99
    %v574 = vunpack.c.h.b16 %v99
    %v575 = vunpack.c.l.b16 %v100
    %v576 = vunpack.c.h.b16 %v100
    %v577 = vunpack.c.l.b16 %v101
    %v578 = vunpack.c.h.b16 %v101
    %v579 = vunpack.c.l.b16 %v102
    %v580 = vunpack.c.h.b16 %v102
    %v581 = vunpack.c.l.b16 %v103
    %v582 = vunpack.c.h.b16 %v103
    %v583 = vunpack.c.l.b16 %v104
    %v584 = vunpack.c.h.b16 %v104
    %v585 = vunpack.c.l.b16 %v105
    %v586 = vunpack.c.h.b16 %v105
    %v587 = vunpack.c.l.b16 %v106
    %v588 = vunpack.c.h.b16 %v106
    %v589 = vunpack.c.l.b16 %v107
    %v590 = vunpack.c.h.b16 %v107
    %v591 = vunpack.c.l.b16 %v108
    %v592 = vunpack.c.h.b16 %v108
    %v593 = vunpack.c.l.b16 %v109
    %v594 = vunpack.c.h.b16 %v109
    %v595 = vunpack.c.l.b16 %v110
    %v596 = vunpack.c.h.b16 %v110
    %v597 = vunpack.c.l.b16 %v111
    %v598 = vunpack.c.h.b16 %v111
    %v599 = vunpack.c.l.b16 %v112
    %v600 = vunpack.c.h.b16 %v112
    %v601 = vunpack.c.l.b16 %v113
    %v602 = vunpack.c.h.b16 %v113
    %v603 = vunpack.c.l.b16 %v114
    %v604 = vunpack.c.h.b16 %v114
    %v605 = vunpack.c.l.b16 %v115
    %v606 = vunpack.c.h.b16 %v115
    %v607 = vunpack.c.l.b16 %v116
    %v608 = vunpack.c.h.b16 %v116
    %v609 = vunpack.c.l.b16 %v117
    %v610 = vunpack.c.h.b16 %v117
    %v611 = vunpack.c.l.b16 %v118
    %v612 = vunpack.c.h.b16 %v118
    %v613 = vunpack.c.l.b16 %v119
    %v614 = vunpack.c.h.b16 %v119
    %v615 = vunpack.c.l.b16 %v120
    %v616 = vunpack.c.h.b16 %v120
    %v617 = vunpack.c.l.b16 %v121
    %v618 = vunpack.c.h.b16 %v121
    %v619 = vunpack.c.l.b16 %v122
    %v620 = vunpack.c.h.b16 %v122
    %v621 = vunpack.c.l.b16 %v123
    %v622 = vunpack.c.h.b16 %v123
    %v623 = vunpack.c.l.b16 %v124
    %v624 = vunpack.c.h.b16 %v124
    %v625 = vunpack.c.l.b16 %v125
    %v626 = vunpack.c.h.b16 %v125
    %v627 = vunpack.c.l.b16 %v126
    %v628 = vunpack.c.h.b16 %v126
    %v629 = vunpack.c.l.b16 %v127
    %v630 = vunpack.c.h.b16 %v127
    %v631 = vunpack.c.l.b16 %v128
    %v632 = vunpack.c.h.b16 %v128
    %v633 = vunpack.c.l.b16 %v129
    %v634 = vunpack.c.h.b16 %v129
    %v635 = vunpack.c.l.b16 %v130
    %v636 = vunpack.c.h.b16 %v130
    %v637 = vunpack.c.l.b16 %v131
    %v638 = vunpack.c.h.b16 %v131
    %v639 = vunpack.c.l.b16 %v132
    %v640 = vunpack.c.h.b16 %v132
    %v641 = vunpack.c.l.b16 %v133
    %v642 = vunpack.c.h.b16 %v133
    %v643 = vunpack.c.l.b16 %v134
    %v644 = vunpack.c.h.b16 %v134
    %v645 = vunpack.c.l.b16 %v135
    %v646 = vunpack.c.h.b16 %v135
    %v647 = vunpack.c.l.b16 %v136
    %v648 = vunpack.c.h.b16 %v136
    %v649 = vunpack.c.l.b16 %v137
    %v650 = vunpack.c.h.b16 %v137
    %v651 = vunpack.c.l.b16 %v138
    %v652 = vunpack.c.h.b16 %v138
    %v653 = vunpack.c.l.b16 %v139
    %v654 = vunpack.c.h.b16 %v139
    %v655 = vunpack.c.l.b16 %v140
    %v656 = vunpack.c.h.b16 %v140
    %v657 = vunpack.c.l.b16 %v141
    %v658 = vunpack.c.h.b16 %v141
    %v659 = vunpack.c.l.b16 %v142
    %v660 = vunpack.c.h.b16 %v142
    %v661 = vunpack.c.l.b16 %v143
    %v662 = vunpack.c.h.b16 %v143
    %v663 = vunpack.c.l.b16 %v144
    %v664 = vunpack.c.h.b16 %v144
    %v665 = vunpack.c.l.b16 %v145
    %v666 = vunpack.c.h.b16 %v145
    %v667 = vunpack.c.l.b16 %v146
    %v668 = vunpack.c.h.b16 %v146
    %v669 = vunpack.c.l.b16 %v147
    %v670 = vunpack.c.h.b16 %v147
    %v671 = vunpack.c.l.b16 %v148
    %v672 = vunpack.c.h.b16 %v148
    %v673 = vunpack.c.l.b16 %v149
    %v674 = vunpack.c.h.b16 %v149
    %v675 = vunpack.c.l.b16 %v150
    %v676 = vunpack.c.h.b16 %v150
    %v677 = vunpack.c.l.b16 %v151
    %v678 = vunpack.c.h.b16 %v151
    %v679 = vunpack.c.l.b16 %v152
    %v680 = vunpack.c.h.b16 %v152
    %v681 = vunpack.c.l.b16 %v153
    %v682 = vunpack.c.h.b16 %v153
    %v683 = vunpack.c.l.b16 %v154
    %v684 = vunpack.c.h.b16 %v154
    %v685 = vunpack.c.l.b16 %v155
    %v686 = vunpack.c.h.b16 %v155
    %v687 = vunpack.c.l.b16 %v156
    %v688 = vunpack.c.h.b16 %v156
    %v689 = vunpack.c.l.b16 %v157
    %v690 = vunpack.c.h.b16 %v157
    %v691 = vunpack.c.l.b16 %v158
    %v692 = vunpack.c.h.b16 %v158
    %v693 = vunpack.c.l.b16 %v159
    %v694 = vunpack.c.h.b16 %v159
    %v695 = vunpack.c.l.b16 %v160
    %v696 = vunpack.c.h.b16 %v160
    %v697 = vunpack.c.l.b16 %v161
    %v698 = vunpack.c.h.b16 %v161
    %v699 = vunpack.c.l.b16 %v162
    %v700 = vunpack.c.h.b16 %v162
    %v701 = vunpack.c.l.b16 %v163
    %v702 = vunpack.c.h.b16 %v163
    %v703 = vunpack.c.l.b16 %v164
    %v704 = vunpack.c.h.b16 %v164
    %v705 = vunpack.c.l.b16 %v165
    %v706 = vunpack.c.h.b16 %v165
    %v707 = vunpack.c.l.b16 %v166
    %v708 = vunpack.c.h.b16 %v166
    %v709 = vunpack.c.l.b16 %v167
    %v710 = vunpack.c.h.b16 %v167
    %v711 = vunpack.c.l.b16 %v168
    %v712 = vunpack.c.h.b16 %v168
    %v713 = vunpack.c.l.b16 %v169
    %v714 = vunpack.c.h.b16 %v169
    %v715 = vunpack.c.l.b16 %v170
    %v716 = vunpack.c.h.b16 %v170
    %v717 = vunpack.c.l.b16 %v171
    %v718 = vunpack.c.h.b16 %v171
    %v719 = vunpack.c.l.b16 %v172
    %v720 = vunpack.c.h.b16 %v172
    %v721 = vunpack.c.l.b16 %v173
    %v722 = vunpack.c.h.b16 %v173
    %v723 = vunpack.c.l.b16 %v174
    %v724 = vunpack.c.h.b16 %v174
    %v725 = vunpack.c.l.b16 %v175
    %v726 = vunpack.c.h.b16 %v175
    %v727 = vunpack.c.l.b16 %v176
    %v728 = vunpack.c.h.b16 %v176
    %v729 = vunpack.c.l.b16 %v177
    %v730 = vunpack.c.h.b16 %v177
    %v731 = vunpack.c.l.b16 %v178
    %v732 = vunpack.c.h.b16 %v178
    %v733 = vunpack.c.l.b16 %v179
    %v734 = vunpack.c.h.b16 %v179
    %v735 = vunpack.c.l.b16 %v180
    %v736 = vunpack.c.h.b16 %v180
    %v737 = vunpack.c.l.b16 %v181
    %v738 = vunpack.c.h.b16 %v181
    %v739 = vunpack.c.l.b16 %v182
    %v740 = vunpack.c.h.b16 %v182
    %v741 = vunpack.c.l.b16 %v183
    %v742 = vunpack.c.h.b16 %v183
    %v743 = vunpack.c.l.b16 %v184
    %v744 = vunpack.c.h.b16 %v184
    %v745 = vunpack.c.l.b16 %v185
    %v746 = vunpack.c.h.b16 %v185
    %v747 = vunpack.c.l.b16 %v186
    %v748 = vunpack.c.h.b16 %v186
    %v749 = vunpack.c.l.b16 %v187
    %v750 = vunpack.c.h.b16 %v187
    %v751 = vunpack.c.l.b16 %v188
    %v752 = vunpack.c.h.b16 %v188
    %v753 = vunpack.c.l.b16 %v189
    %v754 = vunpack.c.h.b16 %v189
    %v755 = vunpack.c.l.b16 %v190
    %v756 = vunpack.c.h.b16 %v190
    %v757 = vunpack.c.l.b16 %v191
    %v758 = vunpack.c.h.b16 %v191
    %v759 = vunpack.c.l.b16 %v192
    %v760 = vunpack.c.h.b16 %v192
    %v761 = vunpack.c.l.b16 %v193
    %v762 = vunpack.c.h.b16 %v193
    %v763 = vunpack.c.l.b16 %v194
    %v764 = vunpack.c.h.b16 %v194
    %v765 = vunpack.c.l.b16 %v195
    %v766 = vunpack.c.h.b16 %v195
    %v767 = vunpack.c.l.b16 %v196
    %v768 = vunpack.c.h.b16 %v196
    %v769 = vunpack.c.l.b16 %v197
    %v770 = vunpack.c.h.b16 %v197
    %v771 = vunpack.c.l.b16 %v198
    %v772 = vunpack.c.h.b16 %v198
    %v773 = vunpack.c.l.b16 %v199
    %v774 = vunpack.c.h.b16 %v199
    %v775 = vunpack.c.l.b16 %v200
    %v776 = vunpack.c.h.b16 %v200
    %v777 = vunpack.c.l.b16 %v201
    %v778 = vunpack.c.h.b16 %v201
    %v779 = vunpack.c.l.b16 %v202
    %v780 = vunpack.c.h.b16 %v202
    %v781 = vunpack.c.l.b16 %v203
    %v782 = vunpack.c.h.b16 %v203
    %v783 = vunpack.c.l.b16 %v204
    %v784 = vunpack.c.h.b16 %v204
    %v785 = vunpack.c.l.b16 %v205
    %v786 = vunpack.c.h.b16 %v205
    %v787 = vunpack.c.l.b16 %v206
    %v788 = vunpack.c.h.b16 %v206
    %v789 = vunpack.c.l.b16 %v207
    %v790 = vunpack.c.h.b16 %v207
    %v791 = vunpack.c.l.b16 %v208
    %v792 = vunpack.c.h.b16 %v208
    %v793 = vunpack.c.l.b16 %v209
    %v794 = vunpack.c.h.b16 %v209
    %v795 = vunpack.c.l.b16 %v210
    %v796 = vunpack.c.h.b16 %v210
    %v797 = vunpack.c.l.b16 %v211
    %v798 = vunpack.c.h.b16 %v211
    %v799 = vunpack.c.l.b16 %v212
    %v800 = vunpack.c.h.b16 %v212
    %v801 = vunpack.c.l.b16 %v213
    %v802 = vunpack.c.h.b16 %v213
    %v803 = vunpack.c.l.b16 %v214
    %v804 = vunpack.c.h.b16 %v214
    %v805 = vunpack.c.l.b16 %v215
    %v806 = vunpack.c.h.b16 %v215
    %v807 = vunpack.c.l.b16 %v216
    %v808 = vunpack.c.h.b16 %v216
    %v809 = vunpack.c.l.b16 %v217
    %v810 = vunpack.c.h.b16 %v217
    %v811 = vunpack.c.l.b16 %v218
    %v812 = vunpack.c.h.b16 %v218
    %v813 = vunpack.c.l.b16 %v219
    %v814 = vunpack.c.h.b16 %v219
    %v815 = vunpack.c.l.b16 %v220
    %v816 = vunpack.c.h.b16 %v220
    %v817 = vunpack.c.l.b16 %v221
    %v818 = vunpack.c.h.b16 %v221
    %v819 = vunpack.c.l.b16 %v222
    %v820 = vunpack.c.h.b16 %v222
    %v821 = vunpack.c.l.b16 %v223
    %v822 = vunpack.c.h.b16 %v223
    %v823 = vunpack.c.l.b16 %v224
    %v824 = vunpack.c.h.b16 %v224
    %v825 = vunpack.c.l.b16 %v225
    %v826 = vunpack.c.h.b16 %v225
    %v827 = vunpack.c.l.b16 %v226
    %v828 = vunpack.c.h.b16 %v226
    %v829 = vunpack.c.l.b16 %v227
    %v830 = vunpack.c.h.b16 %v227
    %v831 = vunpack.c.l.b16 %v228
    %v832 = vunpack.c.h.b16 %v228
    %v833 = vunpack.c.l.b16 %v229
    %v834 = vunpack.c.h.b16 %v229
    %v835 = vunpack.c.l.b16 %v230
    %v836 = vunpack.c.h.b16 %v230
    %v837 = vunpack.c.l.b16 %v231
    %v838 = vunpack.c.h.b16 %v231
    %v839 = vunpack.c.l.b16 %v232
    %v840 = vunpack.c.h.b16 %v232
    %v841 = vunpack.c.l.b16 %v233
    %v842 = vunpack.c.h.b16 %v233
    %v843 = vunpack.c.l.b16 %v234
    %v844 = vunpack.c.h.b16 %v234
    %v845 = vunpack.c.l.b16 %v235
    %v846 = vunpack.c.h.b16 %v235
    %v847 = vunpack.c.l.b16 %v236
    %v848 = vunpack.c.h.b16 %v236
    %v849 = vunpack.c.l.b16 %v237
    %v850 = vunpack.c.h.b16 %v237
    %v851 = vunpack.c.l.b16 %v238
    %v852 = vunpack.c.h.b16 %v238
    %v853 = vunpack.c.l.b16 %v239
    %v854 = vunpack.c.h.b16 %v239
    %v855 = vunpack.c.l.b16 %v240
    %v856 = vunpack.c.h.b16 %v240
    %v857 = vunpack.c.l.b16 %v241
    %v858 = vunpack.c.h.b16 %v241
    %v859 = vunpack.c.l.b16 %v242
    %v860 = vunpack.c.h.b16 %v242
    %v861 = vunpack.c.l.b16 %v243
    %v862 = vunpack.c.h.b16 %v243
    %v863 = vunpack.c.l.b16 %v244
    %v864 = vunpack.c.h.b16 %v244
    %v865 = vunpack.c.l.b16 %v245
    %v866 = vunpack.c.h.b16 %v245
    %v867 = vunpack.c.l.b16 %v246
    %v868 = vunpack.c.h.b16 %v246
    %v869 = vunpack.c.l.b16 %v247
    %v870 = vunpack.c.h.b16 %v247
    %v871 = vunpack.c.l.b16 %v248
    %v872 = vunpack.c.h.b16 %v248
    %v873 = vunpack.c.l.b16 %v249
    %v874 = vunpack.c.h.b16 %v249
    %v875 = vunpack.c.l.b16 %v250
    %v876 = vunpack.c.h.b16 %v250
    %v877 = vunpack.c.l.b16 %v251
    %v878 = vunpack.c.h.b16 %v251
    %v879 = vunpack.c.l.b16 %v252
    %v880 = vunpack.c.h.b16 %v252
    %v881 = vunpack.c.l.b16 %v253
    %v882 = vunpack.c.h.b16 %v253
    %v883 = vunpack.c.l.b16 %v254
    %v884 = vunpack.c.h.b16 %v254
    %v885 = vunpack.c.l.b16 %v255
    %v886 = vunpack.c.h.b16 %v255
    %v887 = vunpack.c.l.b16 %v256
    %v888 = vunpack.c.h.b16 %v256
    %v889 = vunpack.c.l.b16 %v257
    %v890 = vunpack.c.h.b16 %v257
    %v891 = vpack.c.b16 %v503, %v499
    %v892 = vpack.c.b16 %v504, %v500
    %v893 = vpack.c.b16 %v505, %v501
    %v894 = vpack.c.b16 %v506, %v502
    %v895 = vpack.c.b16 %v511, %v507
    %v896 = vpack.c.b16 %v512, %v508
    %v897 = vpack.c.b16 %v513, %v509
    %v898 = vpack.c.b16 %v514, %v510
    %v899 = vpack.c.b16 %v519, %v515
    %v900 = vpack.c.b16 %v520, %v516
    %v901 = vpack.c.b16 %v521, %v517
    %v902 = vpack.c.b16 %v522, %v518
    %v903 = vpack.c.b16 %v527, %v523
    %v904 = vpack.c.b16 %v528, %v524
    %v905 = vpack.c.b16 %v529, %v525
    %v906 = vpack.c.b16 %v530, %v526
    %v907 = vpack.c.b16 %v535, %v531
    %v908 = vpack.c.b16 %v536, %v532
    %v909 = vpack.c.b16 %v537, %v533
    %v910 = vpack.c.b16 %v538, %v534
    %v911 = vpack.c.b16 %v543, %v539
    %v912 = vpack.c.b16 %v544, %v540
    %v913 = vpack.c.b16 %v545, %v541
    %v914 = vpack.c.b16 %v546, %v542
    %v915 = vpack.c.b16 %v551, %v547
    %v916 = vpack.c.b16 %v552, %v548
    %v917 = vpack.c.b16 %v553, %v549
    %v918 = vpack.c.b16 %v554, %v550
    %v919 = vpack.c.b16 %v559, %v555
    %v920 = vpack.c.b16 %v560, %v556
    %v921 = vpack.c.b16 %v561, %v557
    %v922 = vpack.c.b16 %v562, %v558
    %v923 = vpack.c.b16 %v567, %v563
    %v924 = vpack.c.b16 %v568, %v564
    %v925 = vpack.c.b16 %v569, %v565
    %v926 = vpack.c.b16 %v570, %v566
    %v927 = vpack.c.b16 %v575, %v571
    %v928 = vpack.c.b16 %v576, %v572
    %v929 = vpack.c.b16 %v577, %v573
    %v930 = vpack.c.b16 %v578, %v574
    %v931 = vpack.c.b16 %v583, %v579
    %v932 = vpack.c.b16 %v584, %v580
    %v933 = vpack.c.b16 %v585, %v581
    %v934 = vpack.c.b16 %v586, %v582
    %v935 = vpack.c.b16 %v591, %v587
    %v936 = vpack.c.b16 %v592, %v588
    %v937 = vpack.c.b16 %v593, %v589
    %v938 = vpack.c.b16 %v594, %v590
    %v939 = vpack.c.b16 %v599, %v595
    %v940 = vpack.c.b16 %v600, %v596
    %v941 = vpack.c.b16 %v601, %v597
    %v942 = vpack.c.b16 %v602, %v598
    %v943 = vpack.c.b16 %v607, %v603
    %v944 = vpack.c.b16 %v608, %v604
    %v945 = vpack.c.b16 %v609, %v605
    %v946 = vpack.c.b16 %v610, %v606
    %v947 = vpack.c.b16 %v615, %v611
    %v948 = vpack.c.b16 %v616, %v612
    %v949 = vpack.c.b16 %v617, %v613
    %v950 = vpack.c.b16 %v618, %v614
    %v951 = vpack.c.b16 %v623, %v619
    %v952 = vpack.c.b16 %v624, %v620
    %v953 = vpack.c.b16 %v625, %v621
    %v954 = vpack.c.b16 %v626, %v622
    %v955 = vpack.c.b16 %v631, %v627
    %v956 = vpack.c.b16 %v632, %v628
    %v957 = vpack.c.b16 %v633, %v629
    %v958 = vpack.c.b16 %v634, %v630
    %v959 = vpack.c.b16 %v639, %v635
    %v960 = vpack.c.b16 %v640, %v636
    %v961 = vpack.c.b16 %v641, %v637
    %v962 = vpack.c.b16 %v642, %v638
    %v963 = vpack.c.b16 %v647, %v643
    %v964 = vpack.c.b16 %v648, %v644
    %v965 = vpack.c.b16 %v649, %v645
    %v966 = vpack.c.b16 %v650, %v646
    %v967 = vpack.c.b16 %v655, %v651
    %v968 = vpack.c.b16 %v656, %v652
    %v969 = vpack.c.b16 %v657, %v653
    %v970 = vpack.c.b16 %v658, %v654
    %v971 = vpack.c.b16 %v663, %v659
    %v972 = vpack.c.b16 %v664, %v660
    %v973 = vpack.c.b16 %v665, %v661
    %v974 = vpack.c.b16 %v666, %v662
    %v975 = vpack.c.b16 %v671, %v667
    %v976 = vpack.c.b16 %v672, %v668
    %v977 = vpack.c.b16 %v673, %v669
    %v978 = vpack.c.b16 %v674, %v670
    %v979 = vpack.c.b16 %v679, %v675
    %v980 = vpack.c.b16 %v680, %v676
    %v981 = vpack.c.b16 %v681, %v677
    %v982 = vpack.c.b16 %v682, %v678
    %v983 = vpack.c.b16 %v687, %v683
    %v984 = vpack.c.b16 %v688, %v684
    %v985 = vpack.c.b16 %v689, %v685
    %v986 = vpack.c.b16 %v690, %v686
    %v987 = vpack.c.b16 %v695, %v691
    %v988 = vpack.c.b16 %v696, %v692
    %v989 = vpack.c.b16 %v697, %v693
    %v990 = vpack.c.b16 %v698, %v694
    %v991 = vpack.c.b16 %v703, %v699
    %v992 = vpack.c.b16 %v704, %v700
    %v993 = vpack.c.b16 %v705, %v701
    %v994 = vpack.c.b16 %v706, %v702
    %v995 = vpack.c.b16 %v711, %v707
    %v996 = vpack.c.b16 %v712, %v708
    %v997 = vpack.c.b16 %v713, %v709
    %v998 = vpack.c.b16 %v714, %v710
    %v999 = vpack.c.b16 %v719, %v715
    %v1000 = vpack.c.b16 %v720, %v716
    %v1001 = vpack.c.b16 %v721, %v717
    %v1002 = vpack.c.b16 %v722, %v718
    %v1003 = vpack.c.b16 %v727, %v723
    %v1004 = vpack.c.b16 %v728, %v724
    %v1005 = vpack.c.b16 %v729, %v725
    %v1006 = vpack.c.b16 %v730, %v726
    %v1007 = vpack.c.b16 %v735, %v731
    %v1008 = vpack.c.b16 %v736, %v732
    %v1009 = vpack.c.b16 %v737, %v733
    %v1010 = vpack.c.b16 %v738, %v734
    %v1011 = vpack.c.b16 %v743, %v739
    %v1012 = vpack.c.b16 %v744, %v740
    %v1013 = vpack.c.b16 %v745, %v741
    %v1014 = vpack.c.b16 %v746, %v742
    %v1015 = vpack.c.b16 %v751, %v747
    %v1016 = vpack.c.b16 %v752, %v748
    %v1017 = vpack.c.b16 %v753, %v749
    %v1018 = vpack.c.b16 %v754, %v750
    %v1019 = vpack.c.b16 %v759, %v755
    %v1020 = vpack.c.b16 %v760, %v756
    %v1021 = vpack.c.b16 %v761, %v757
    %v1022 = vpack.c.b16 %v762, %v758
    %v1023 = vpack.c.b16 %v767, %v763
    %v1024 = vpack.c.b16 %v768, %v764
    %v1025 = vpack.c.b16 %v769, %v765
    %v1026 = vpack.c.b16 %v770, %v766
    %v1027 = vpack.c.b16 %v775, %v771
    %v1028 = vpack.c.b16 %v776, %v772
    %v1029 = vpack.c.b16 %v777, %v773
    %v1030 = vpack.c.b16 %v778, %v774
    %v1031 = vpack.c.b16 %v783, %v779
    %v1032 = vpack.c.b16 %v784, %v780
    %v1033 = vpack.c.b16 %v785, %v781
    %v1034 = vpack.c.b16 %v786, %v782
    %v1035 = vpack.c.b16 %v791, %v787
    %v1036 = vpack.c.b16 %v792, %v788
    %v1037 = vpack.c.b16 %v793, %v789
    %v1038 = vpack.c.b16 %v794, %v790
    %v1039 = vpack.c.b16 %v799, %v795
    %v1040 = vpack.c.b16 %v800, %v796
    %v1041 = vpack.c.b16 %v801, %v797
    %v1042 = vpack.c.b16 %v802, %v798
    %v1043 = vpack.c.b16 %v807, %v803
    %v1044 = vpack.c.b16 %v808, %v804
    %v1045 = vpack.c.b16 %v809, %v805
    %v1046 = vpack.c.b16 %v810, %v806
    %v1047 = vpack.c.b16 %v815, %v811
    %v1048 = vpack.c.b16 %v816, %v812
    %v1049 = vpack.c.b16 %v817, %v813
    %v1050 = vpack.c.b16 %v818, %v814
    %v1051 = vpack.c.b16 %v823, %v819
    %v1052 = vpack.c.b16 %v824, %v820
    %v1053 = vpack.c.b16 %v825, %v821
    %v1054 = vpack.c.b16 %v826, %v822
    %v1055 = vpack.c.b16 %v831, %v827
    %v1056 = vpack.c.b16 %v832, %v828
    %v1057 = vpack.c.b16 %v833, %v829
    %v1058 = vpack.c.b16 %v834, %v830
    %v1059 = vpack.c.b16 %v839, %v835
    %v1060 = vpack.c.b16 %v840, %v836
    %v1061 = vpack.c.b16 %v841, %v837
    %v1062 = vpack.c.b16 %v842, %v838
    %v1063 = vpack.c.b16 %v847, %v843
    %v1064 = vpack.c.b16 %v848, %v844
    %v1065 = vpack.c.b16 %v849, %v845
    %v1066 = vpack.c.b16 %v850, %v846
    %v1067 = vpack.c.b16 %v855, %v851
    %v1068 = vpack.c.b16 %v856, %v852
    %v1069 = vpack.c.b16 %v857, %v853
    %v1070 = vpack.c.b16 %v858, %v854
    %v1071 = vpack.c.b16 %v863, %v859
    %v1072 = vpack.c.b16 %v864, %v860
    %v1073 = vpack.c.b16 %v865, %v861
    %v1074 = vpack.c.b16 %v866, %v862
    %v1075 = vpack.c.b16 %v871, %v867
    %v1076 = vpack.c.b16 %v872, %v868
    %v1077 = vpack.c.b16 %v873, %v869
    %v1078 = vpack.c.b16 %v874, %v870
    %v1079 = vpack.c.b16 %v879, %v875
    %v1080 = vpack.c.b16 %v880, %v876
    %v1081 = vpack.c.b16 %v881, %v877
    %v1082 = vpack.c.b16 %v882, %v878
    %v1083 = vpack.c.b16 %v887, %v883
    %v1084 = vpack.c.b16 %v888, %v884
    %v1085 = vpack.c.b16 %v889, %v885
    %v1086 = vpack.c.b16 %v890, %v886
    %vm1283 = vcmask 130048
    %v1285 = vsel %vm1283, %v296, 0
    %1287 = vmatprep.subr.bf16.mxu0 %v920
    %1288 = vmatpush1.bf16.msra.mxu0 %v919
    %1289 = vmatprep.subr.bf16.mxu0 %v916
    %1290 = vmatpush1.bf16.msra.mxu0 %v915
    %1291 = vmatprep.subr.bf16.mxu0 %v912
    %1292 = vmatpush1.bf16.msra.mxu0 %v911
    %1293 = vmatprep.subr.bf16.mxu0 %v908
    %1294 = vmatpush1.bf16.msra.mxu0 %v907
    %1295 = vmatprep.subr.bf16.mxu0 %v904
    %1296 = vmatpush1.bf16.msra.mxu0 %v903
    %1297 = vmatprep.subr.bf16.mxu0 %v900
    %1298 = vmatpush1.bf16.msra.mxu0 %v899
    %1299 = vmatprep.subr.bf16.mxu0 %v896
    %1300 = vmatpush1.bf16.msra.mxu0 %v895
    %1301 = vmatprep.subr.bf16.mxu0 %v892
    %1302 = vmatpush1.bf16.msra.mxu0 %v891
    %1303 = vmatprep.subr.bf16.mxu0 %v952
    %1304 = vmatpush2.bf16.msra.mxu0 %v951
    %1305 = vmatprep.subr.bf16.mxu0 %v948
    %1306 = vmatpush2.bf16.msra.mxu0 %v947
    %1307 = vmatprep.subr.bf16.mxu0 %v944
    %1308 = vmatpush2.bf16.msra.mxu0 %v943
    %1309 = vmatprep.subr.bf16.mxu0 %v940
    %1310 = vmatpush2.bf16.msra.mxu0 %v939
    %1311 = vmatprep.subr.bf16.mxu0 %v936
    %1312 = vmatpush2.bf16.msra.mxu0 %v935
    %1313 = vmatprep.subr.bf16.mxu0 %v932
    %1314 = vmatpush2.bf16.msra.mxu0 %v931
    %1315 = vmatprep.subr.bf16.mxu0 %v928
    %1316 = vmatpush2.bf16.msra.mxu0 %v927
    %1317 = vmatprep.subr.bf16.mxu0 %v924
    %1318 = vmatpush2.bf16.msra.mxu0 %v923
    %1319 = vmatprep.mubr.bf16.mxu0 %v291
    %1320 = vmatmul.mubr.bf16.gmra.mxu0 %v290
    %v1321 = vpop.f32.mrf.mxu0
    %v1322 = vadd.f32 %v262, %v1321
    %v1323 = vpop.f32.mrf.mxu0
    %v1324 = vadd.f32 %v266, %v1323
    %v1325 = vpop.f32.mrf.mxu0
    %v1326 = vpop.f32.mrf.mxu0
    %1327 = vdwg.mxu0
    %1328 = vmatprep.subr.bf16.mxu0 %v984
    %1329 = vmatpush1.bf16.msra.mxu0 %v983
    %1330 = vmatprep.subr.bf16.mxu0 %v980
    %1331 = vmatpush1.bf16.msra.mxu0 %v979
    %1332 = vmatprep.subr.bf16.mxu0 %v976
    %1333 = vmatpush1.bf16.msra.mxu0 %v975
    %1334 = vmatprep.subr.bf16.mxu0 %v972
    %1335 = vmatpush1.bf16.msra.mxu0 %v971
    %1336 = vmatprep.subr.bf16.mxu0 %v968
    %1337 = vmatpush1.bf16.msra.mxu0 %v967
    %1338 = vmatprep.subr.bf16.mxu0 %v964
    %1339 = vmatpush1.bf16.msra.mxu0 %v963
    %1340 = vmatprep.subr.bf16.mxu0 %v960
    %1341 = vmatpush1.bf16.msra.mxu0 %v959
    %1342 = vmatprep.subr.bf16.mxu0 %v956
    %1343 = vmatpush1.bf16.msra.mxu0 %v955
    %1344 = vmatprep.subr.bf16.mxu0 %v1016
    %1345 = vmatpush2.bf16.msra.mxu0 %v1015
    %1346 = vmatprep.subr.bf16.mxu0 %v1012
    %1347 = vmatpush2.bf16.msra.mxu0 %v1011
    %1348 = vmatprep.subr.bf16.mxu0 %v1008
    %1349 = vmatpush2.bf16.msra.mxu0 %v1007
    %1350 = vmatprep.subr.bf16.mxu0 %v1004
    %1351 = vmatpush2.bf16.msra.mxu0 %v1003
    %1352 = vmatprep.subr.bf16.mxu0 %v1000
    %1353 = vmatpush2.bf16.msra.mxu0 %v999
    %1354 = vmatprep.subr.bf16.mxu0 %v996
    %1355 = vmatpush2.bf16.msra.mxu0 %v995
    %1356 = vmatprep.subr.bf16.mxu0 %v992
    %1357 = vmatpush2.bf16.msra.mxu0 %v991
    %1358 = vmatprep.subr.bf16.mxu0 %v988
    %1359 = vmatpush2.bf16.msra.mxu0 %v987
    %1360 = vmatprep.mubr.bf16.mxu0 %v293
    %1361 = vmatmul.mubr.bf16.gmra.mxu0 %v292
    %v1362 = vpop.f32.mrf.mxu0
    %v1363 = vadd.f32 %v1322, %v1362
    %v1364 = vpop.f32.mrf.mxu0
    %v1365 = vadd.f32 %v1324, %v1364
    %v1366 = vpop.f32.mrf.mxu0
    %v1367 = vpop.f32.mrf.mxu0
    %1368 = vdwg.mxu0
    %1369 = vmatprep.subr.bf16.mxu0 %v1048
    %1370 = vmatpush1.bf16.msra.mxu0 %v1047
    %1371 = vmatprep.subr.bf16.mxu0 %v1044
    %1372 = vmatpush1.bf16.msra.mxu0 %v1043
    %1373 = vmatprep.subr.bf16.mxu0 %v1040
    %1374 = vmatpush1.bf16.msra.mxu0 %v1039
    %1375 = vmatprep.subr.bf16.mxu0 %v1036
    %1376 = vmatpush1.bf16.msra.mxu0 %v1035
    %1377 = vmatprep.subr.bf16.mxu0 %v1032
    %1378 = vmatpush1.bf16.msra.mxu0 %v1031
    %1379 = vmatprep.subr.bf16.mxu0 %v1028
    %1380 = vmatpush1.bf16.msra.mxu0 %v1027
    %1381 = vmatprep.subr.bf16.mxu0 %v1024
    %1382 = vmatpush1.bf16.msra.mxu0 %v1023
    %1383 = vmatprep.subr.bf16.mxu0 %v1020
    %1384 = vmatpush1.bf16.msra.mxu0 %v1019
    %1385 = vmatprep.subr.bf16.mxu0 %v1080
    %1386 = vmatpush2.bf16.msra.mxu0 %v1079
    %1387 = vmatprep.subr.bf16.mxu0 %v1076
    %1388 = vmatpush2.bf16.msra.mxu0 %v1075
    %1389 = vmatprep.subr.bf16.mxu0 %v1072
    %1390 = vmatpush2.bf16.msra.mxu0 %v1071
    %1391 = vmatprep.subr.bf16.mxu0 %v1068
    %1392 = vmatpush2.bf16.msra.mxu0 %v1067
    %1393 = vmatprep.subr.bf16.mxu0 %v1064
    %1394 = vmatpush2.bf16.msra.mxu0 %v1063
    %1395 = vmatprep.subr.bf16.mxu0 %v1060
    %1396 = vmatpush2.bf16.msra.mxu0 %v1059
    %1397 = vmatprep.subr.bf16.mxu0 %v1056
    %1398 = vmatpush2.bf16.msra.mxu0 %v1055
    %1399 = vmatprep.subr.bf16.mxu0 %v1052
    %1400 = vmatpush2.bf16.msra.mxu0 %v1051
    %1401 = vmatprep.mubr.bf16.mxu0 %v295
    %1402 = vmatmul.mubr.bf16.gmra.mxu0 %v294
    %v1403 = vpop.f32.mrf.mxu0
    %v1404 = vadd.f32 %v1363, %v1403
    %v1405 = vpop.f32.mrf.mxu0
    %v1406 = vadd.f32 %v1365, %v1405
    %v1407 = vpop.f32.mrf.mxu0
    %v1408 = vpop.f32.mrf.mxu0
    %1409 = vdwg.mxu0
    %1410 = vmatprep.subr.bf16.mxu0 0
    %1411 = vmatpush1.bf16.msra.mxu0 0
    %1412 = vmatprep.subr.bf16.mxu0 0
    %1413 = vmatpush1.bf16.msra.mxu0 0
    %1414 = vmatprep.subr.bf16.mxu0 0
    %1415 = vmatpush1.bf16.msra.mxu0 0
    %1416 = vmatprep.subr.bf16.mxu0 0
    %1417 = vmatpush1.bf16.msra.mxu0 0
    %1418 = vmatprep.subr.bf16.mxu0 0
    %1419 = vmatpush1.bf16.msra.mxu0 0
    %1420 = vmatprep.subr.bf16.mxu0 0
    %1421 = vmatpush1.bf16.msra.mxu0 0
    %1422 = vmatprep.subr.bf16.mxu0 0
    %1423 = vmatpush1.bf16.msra.mxu0 0
    %1424 = vmatprep.subr.bf16.mxu0 %v1084
    %1425 = vmatpush1.bf16.msra.mxu0 %v1083
    %1426 = vmatprep.subr.bf16.mxu0 0
    %1427 = vmatpush2.bf16.msra.mxu0 0
    %1428 = vmatprep.subr.bf16.mxu0 0
    %1429 = vmatpush2.bf16.msra.mxu0 0
    %1430 = vmatprep.subr.bf16.mxu0 0
    %1431 = vmatpush2.bf16.msra.mxu0 0
    %1432 = vmatprep.subr.bf16.mxu0 0
    %1433 = vmatpush2.bf16.msra.mxu0 0
    %1434 = vmatprep.subr.bf16.mxu0 0
    %1435 = vmatpush2.bf16.msra.mxu0 0
    %1436 = vmatprep.subr.bf16.mxu0 0
    %1437 = vmatpush2.bf16.msra.mxu0 0
    %1438 = vmatprep.subr.bf16.mxu0 0
    %1439 = vmatpush2.bf16.msra.mxu0 0
    %1440 = vmatprep.subr.bf16.mxu0 0
    %1441 = vmatpush2.bf16.msra.mxu0 0
    %1442 = vmatprep.mubr.bf16.mxu0 0
    %1443 = vmatmul.mubr.bf16.gmra.mxu0 %v1285
    %v1444 = vpop.f32.mrf.mxu0
    %v1445 = vadd.f32 %v1404, %v1444
    %v1446 = vpop.f32.mrf.mxu0
    %v1447 = vadd.f32 %v1406, %v1446
    %v1448 = vpop.f32.mrf.mxu0
    %v1449 = vpop.f32.mrf.mxu0
    %1450 = vdwg.mxu0
    %1451 = vmatprep.subr.bf16.mxu0 %v922
    %1452 = vmatpush1.bf16.msra.mxu0 %v921
    %1453 = vmatprep.subr.bf16.mxu0 %v918
    %1454 = vmatpush1.bf16.msra.mxu0 %v917
    %1455 = vmatprep.subr.bf16.mxu0 %v914
    %1456 = vmatpush1.bf16.msra.mxu0 %v913
    %1457 = vmatprep.subr.bf16.mxu0 %v910
    %1458 = vmatpush1.bf16.msra.mxu0 %v909
    %1459 = vmatprep.subr.bf16.mxu0 %v906
    %1460 = vmatpush1.bf16.msra.mxu0 %v905
    %1461 = vmatprep.subr.bf16.mxu0 %v902
    %1462 = vmatpush1.bf16.msra.mxu0 %v901
    %1463 = vmatprep.subr.bf16.mxu0 %v898
    %1464 = vmatpush1.bf16.msra.mxu0 %v897
    %1465 = vmatprep.subr.bf16.mxu0 %v894
    %1466 = vmatpush1.bf16.msra.mxu0 %v893
    %1467 = vmatprep.subr.bf16.mxu0 %v954
    %1468 = vmatpush2.bf16.msra.mxu0 %v953
    %1469 = vmatprep.subr.bf16.mxu0 %v950
    %1470 = vmatpush2.bf16.msra.mxu0 %v949
    %1471 = vmatprep.subr.bf16.mxu0 %v946
    %1472 = vmatpush2.bf16.msra.mxu0 %v945
    %1473 = vmatprep.subr.bf16.mxu0 %v942
    %1474 = vmatpush2.bf16.msra.mxu0 %v941
    %1475 = vmatprep.subr.bf16.mxu0 %v938
    %1476 = vmatpush2.bf16.msra.mxu0 %v937
    %1477 = vmatprep.subr.bf16.mxu0 %v934
    %1478 = vmatpush2.bf16.msra.mxu0 %v933
    %1479 = vmatprep.subr.bf16.mxu0 %v930
    %1480 = vmatpush2.bf16.msra.mxu0 %v929
    %1481 = vmatprep.subr.bf16.mxu0 %v926
    %1482 = vmatpush2.bf16.msra.mxu0 %v925
    %1483 = vmatprep.mubr.bf16.mxu0 %v291
    %1484 = vmatmul.mubr.bf16.gmra.mxu0 %v290
    %v1485 = vpop.f32.mrf.mxu0
    %v1486 = vadd.f32 %v270, %v1485
    %v1487 = vpop.f32.mrf.mxu0
    %v1488 = vadd.f32 %v274, %v1487
    %v1489 = vpop.f32.mrf.mxu0
    %v1490 = vpop.f32.mrf.mxu0
    %1491 = vdwg.mxu0
    %1492 = vmatprep.subr.bf16.mxu0 %v986
    %1493 = vmatpush1.bf16.msra.mxu0 %v985
    %1494 = vmatprep.subr.bf16.mxu0 %v982
    %1495 = vmatpush1.bf16.msra.mxu0 %v981
    %1496 = vmatprep.subr.bf16.mxu0 %v978
    %1497 = vmatpush1.bf16.msra.mxu0 %v977
    %1498 = vmatprep.subr.bf16.mxu0 %v974
    %1499 = vmatpush1.bf16.msra.mxu0 %v973
    %1500 = vmatprep.subr.bf16.mxu0 %v970
    %1501 = vmatpush1.bf16.msra.mxu0 %v969
    %1502 = vmatprep.subr.bf16.mxu0 %v966
    %1503 = vmatpush1.bf16.msra.mxu0 %v965
    %1504 = vmatprep.subr.bf16.mxu0 %v962
    %1505 = vmatpush1.bf16.msra.mxu0 %v961
    %1506 = vmatprep.subr.bf16.mxu0 %v958
    %1507 = vmatpush1.bf16.msra.mxu0 %v957
    %1508 = vmatprep.subr.bf16.mxu0 %v1018
    %1509 = vmatpush2.bf16.msra.mxu0 %v1017
    %1510 = vmatprep.subr.bf16.mxu0 %v1014
    %1511 = vmatpush2.bf16.msra.mxu0 %v1013
    %1512 = vmatprep.subr.bf16.mxu0 %v1010
    %1513 = vmatpush2.bf16.msra.mxu0 %v1009
    %1514 = vmatprep.subr.bf16.mxu0 %v1006
    %1515 = vmatpush2.bf16.msra.mxu0 %v1005
    %1516 = vmatprep.subr.bf16.mxu0 %v1002
    %1517 = vmatpush2.bf16.msra.mxu0 %v1001
    %1518 = vmatprep.subr.bf16.mxu0 %v998
    %1519 = vmatpush2.bf16.msra.mxu0 %v997
    %1520 = vmatprep.subr.bf16.mxu0 %v994
    %1521 = vmatpush2.bf16.msra.mxu0 %v993
    %1522 = vmatprep.subr.bf16.mxu0 %v990
    %1523 = vmatpush2.bf16.msra.mxu0 %v989
    %1524 = vmatprep.mubr.bf16.mxu0 %v293
    %1525 = vmatmul.mubr.bf16.gmra.mxu0 %v292
    %v1526 = vpop.f32.mrf.mxu0
    %v1527 = vadd.f32 %v1486, %v1526
    %v1528 = vpop.f32.mrf.mxu0
    %v1529 = vadd.f32 %v1488, %v1528
    %v1530 = vpop.f32.mrf.mxu0
    %v1531 = vpop.f32.mrf.mxu0
    %1532 = vdwg.mxu0
    %1533 = vmatprep.subr.bf16.mxu0 %v1050
    %1534 = vmatpush1.bf16.msra.mxu0 %v1049
    %1535 = vmatprep.subr.bf16.mxu0 %v1046
    %1536 = vmatpush1.bf16.msra.mxu0 %v1045
    %1537 = vmatprep.subr.bf16.mxu0 %v1042
    %1538 = vmatpush1.bf16.msra.mxu0 %v1041
    %1539 = vmatprep.subr.bf16.mxu0 %v1038
    %1540 = vmatpush1.bf16.msra.mxu0 %v1037
    %1541 = vmatprep.subr.bf16.mxu0 %v1034
    %1542 = vmatpush1.bf16.msra.mxu0 %v1033
    %1543 = vmatprep.subr.bf16.mxu0 %v1030
    %1544 = vmatpush1.bf16.msra.mxu0 %v1029
    %1545 = vmatprep.subr.bf16.mxu0 %v1026
    %1546 = vmatpush1.bf16.msra.mxu0 %v1025
    %1547 = vmatprep.subr.bf16.mxu0 %v1022
    %1548 = vmatpush1.bf16.msra.mxu0 %v1021
    %1549 = vmatprep.subr.bf16.mxu0 %v1082
    %1550 = vmatpush2.bf16.msra.mxu0 %v1081
    %1551 = vmatprep.subr.bf16.mxu0 %v1078
    %1552 = vmatpush2.bf16.msra.mxu0 %v1077
    %1553 = vmatprep.subr.bf16.mxu0 %v1074
    %1554 = vmatpush2.bf16.msra.mxu0 %v1073
    %1555 = vmatprep.subr.bf16.mxu0 %v1070
    %1556 = vmatpush2.bf16.msra.mxu0 %v1069
    %1557 = vmatprep.subr.bf16.mxu0 %v1066
    %1558 = vmatpush2.bf16.msra.mxu0 %v1065
    %1559 = vmatprep.subr.bf16.mxu0 %v1062
    %1560 = vmatpush2.bf16.msra.mxu0 %v1061
    %1561 = vmatprep.subr.bf16.mxu0 %v1058
    %1562 = vmatpush2.bf16.msra.mxu0 %v1057
    %1563 = vmatprep.subr.bf16.mxu0 %v1054
    %1564 = vmatpush2.bf16.msra.mxu0 %v1053
    %1565 = vmatprep.mubr.bf16.mxu0 %v295
    %1566 = vmatmul.mubr.bf16.gmra.mxu0 %v294
    %v1567 = vpop.f32.mrf.mxu0
    %v1568 = vadd.f32 %v1527, %v1567
    %v1569 = vpop.f32.mrf.mxu0
    %v1570 = vadd.f32 %v1529, %v1569
    %v1571 = vpop.f32.mrf.mxu0
    %v1572 = vpop.f32.mrf.mxu0
    %1573 = vdwg.mxu0
    %1574 = vmatprep.subr.bf16.mxu0 0
    %1575 = vmatpush1.bf16.msra.mxu0 0
    %1576 = vmatprep.subr.bf16.mxu0 0
    %1577 = vmatpush1.bf16.msra.mxu0 0
    %1578 = vmatprep.subr.bf16.mxu0 0
    %1579 = vmatpush1.bf16.msra.mxu0 0
    %1580 = vmatprep.subr.bf16.mxu0 0
    %1581 = vmatpush1.bf16.msra.mxu0 0
    %1582 = vmatprep.subr.bf16.mxu0 0
    %1583 = vmatpush1.bf16.msra.mxu0 0
    %1584 = vmatprep.subr.bf16.mxu0 0
    %1585 = vmatpush1.bf16.msra.mxu0 0
    %1586 = vmatprep.subr.bf16.mxu0 0
    %1587 = vmatpush1.bf16.msra.mxu0 0
    %1588 = vmatprep.subr.bf16.mxu0 %v1086
    %1589 = vmatpush1.bf16.msra.mxu0 %v1085
    %1590 = vmatprep.subr.bf16.mxu0 0
    %1591 = vmatpush2.bf16.msra.mxu0 0
    %1592 = vmatprep.subr.bf16.mxu0 0
    %1593 = vmatpush2.bf16.msra.mxu0 0
    %1594 = vmatprep.subr.bf16.mxu0 0
    %1595 = vmatpush2.bf16.msra.mxu0 0
    %1596 = vmatprep.subr.bf16.mxu0 0
    %1597 = vmatpush2.bf16.msra.mxu0 0
    %1598 = vmatprep.subr.bf16.mxu0 0
    %1599 = vmatpush2.bf16.msra.mxu0 0
    %1600 = vmatprep.subr.bf16.mxu0 0
    %1601 = vmatpush2.bf16.msra.mxu0 0
    %1602 = vmatprep.subr.bf16.mxu0 0
    %1603 = vmatpush2.bf16.msra.mxu0 0
    %1604 = vmatprep.subr.bf16.mxu0 0
    %1605 = vmatpush2.bf16.msra.mxu0 0
    %1606 = vmatprep.mubr.bf16.mxu0 0
    %1607 = vmatmul.mubr.bf16.gmra.mxu0 %v1285
    %v1608 = vpop.f32.mrf.mxu0
    %v1609 = vadd.f32 %v1568, %v1608
    %v1610 = vpop.f32.mrf.mxu0
    %v1611 = vadd.f32 %v1570, %v1610
    %v1612 = vpop.f32.mrf.mxu0
    %v1613 = vpop.f32.mrf.mxu0
    %1614 = vdwg.mxu0
    %v1615 = vmul.f32 %v1445, 0.2
    %v1616 = vmul.f32 %v1447, 0.2
    %v1617 = vmul.f32 %v1609, 0.2
    %v1618 = vmul.f32 %v1611, 0.2
    %v1619 = vmax.f32 %v1445, %v1615
    %v1620 = vmax.f32 %v1447, %v1616
    %v1621 = vmax.f32 %v1609, %v1617
    %v1622 = vmax.f32 %v1611, %v1618
    %v1623 = vpack.c.bf16 %v1619, %v1619
    %v1624 = vpack.c.bf16 %v1620, %v1620
    %v1625 = vpack.c.bf16 %v1621, %v1621
    %v1626 = vpack.c.bf16 %v1622, %v1622
    %v1627 = vld [vmem:[#allocation4] sm:$0xff]
    %v1628 = vld [vmem:[#allocation4 + $0x8] sm:$0xff]
    %v1629 = vld [vmem:[#allocation4 + $0x10] sm:$0xff]
    %v1630 = vld [vmem:[#allocation4 + $0x18] sm:$0xff]
    %v1631 = vld [vmem:[#allocation4 + $0x20] sm:$0xff]
    %v1632 = vld [vmem:[#allocation4 + $0x28] sm:$0xff]
    %v1633 = vld [vmem:[#allocation4 + $0x30] sm:$0xff]
    %v1634 = vld [vmem:[#allocation4 + $0x38] sm:$0xff]
    %v1635 = vld [vmem:[#allocation4 + $0x40] sm:$0xff]
    %v1636 = vld [vmem:[#allocation4 + $0x48] sm:$0xff]
    %v1637 = vld [vmem:[#allocation4 + $0x50] sm:$0xff]
    %v1638 = vld [vmem:[#allocation4 + $0x58] sm:$0xff]
    %v1639 = vld [vmem:[#allocation4 + $0x60] sm:$0xff]
    %v1640 = vld [vmem:[#allocation4 + $0x68] sm:$0xff]
    %v1641 = vld [vmem:[#allocation4 + $0x70] sm:$0xff]
    %v1642 = vld [vmem:[#allocation4 + $0x78] sm:$0xff]
    %v1643 = vld [vmem:[#allocation4 + $0x80] sm:$0xff]
    %v1644 = vld [vmem:[#allocation4 + $0x88] sm:$0xff]
    %v1645 = vld [vmem:[#allocation4 + $0x90] sm:$0xff]
    %v1646 = vld [vmem:[#allocation4 + $0x98] sm:$0xff]
    %v1647 = vld [vmem:[#allocation4 + $0xa0] sm:$0xff]
    %v1648 = vld [vmem:[#allocation4 + $0xa8] sm:$0xff]
    %v1649 = vld [vmem:[#allocation4 + $0xb0] sm:$0xff]
    %v1650 = vld [vmem:[#allocation4 + $0xb8] sm:$0xff]
    %v1651 = vld [vmem:[#allocation4 + $0xc0] sm:$0xff]
    %v1652 = vld [vmem:[#allocation4 + $0xc8] sm:$0xff]
    %v1653 = vld [vmem:[#allocation4 + $0xd0] sm:$0xff]
    %v1654 = vld [vmem:[#allocation4 + $0xd8] sm:$0xff]
    %v1655 = vld [vmem:[#allocation4 + $0xe0] sm:$0xff]
    %v1656 = vld [vmem:[#allocation4 + $0xe8] sm:$0xff]
    %v1657 = vld [vmem:[#allocation4 + $0xf0] sm:$0xff]
    %v1658 = vld [vmem:[#allocation4 + $0xf8] sm:$0xff]
    %v1659 = vld [vmem:[#allocation4 + $0x100] sm:$0xff]
    %v1660 = vld [vmem:[#allocation4 + $0x108] sm:$0xff]
    %v1661 = vld [vmem:[#allocation4 + $0x110] sm:$0xff]
    %v1662 = vld [vmem:[#allocation4 + $0x118] sm:$0xff]
    %v1663 = vld [vmem:[#allocation4 + $0x120] sm:$0xff]
    %v1664 = vld [vmem:[#allocation4 + $0x128] sm:$0xff]
    %v1665 = vld [vmem:[#allocation4 + $0x130] sm:$0xff]
    %v1666 = vld [vmem:[#allocation4 + $0x138] sm:$0xff]
    %v1667 = vld [vmem:[#allocation4 + $0x140] sm:$0xff]
    %v1668 = vld [vmem:[#allocation4 + $0x148] sm:$0xff]
    %v1669 = vld [vmem:[#allocation4 + $0x150] sm:$0xff]
    %v1670 = vld [vmem:[#allocation4 + $0x158] sm:$0xff]
    %v1671 = vld [vmem:[#allocation4 + $0x160] sm:$0xff]
    %v1672 = vld [vmem:[#allocation4 + $0x168] sm:$0xff]
    %v1673 = vld [vmem:[#allocation4 + $0x170] sm:$0xff]
    %v1674 = vld [vmem:[#allocation4 + $0x178] sm:$0xff]
    %v1675 = vld [vmem:[#allocation4 + $0x180] sm:$0xff]
    %v1676 = vld [vmem:[#allocation4 + $0x188] sm:$0xff]
    %v1677 = vld [vmem:[#allocation4 + $0x190] sm:$0xff]
    %v1678 = vld [vmem:[#allocation4 + $0x198] sm:$0xff]
    %v1679 = vld [vmem:[#allocation4 + $0x1a0] sm:$0xff]
    %v1680 = vld [vmem:[#allocation4 + $0x1a8] sm:$0xff]
    %v1681 = vld [vmem:[#allocation4 + $0x1b0] sm:$0xff]
    %v1682 = vld [vmem:[#allocation4 + $0x1b8] sm:$0xff]
    %v1683 = vld [vmem:[#allocation4 + $0x1c0] sm:$0xff]
    %v1684 = vld [vmem:[#allocation4 + $0x1c8] sm:$0xff]
    %v1685 = vld [vmem:[#allocation4 + $0x1d0] sm:$0xff]
    %v1686 = vld [vmem:[#allocation4 + $0x1d8] sm:$0xff]
    %v1687 = vld [vmem:[#allocation4 + $0x1e0] sm:$0xff]
    %v1688 = vld [vmem:[#allocation4 + $0x1e8] sm:$0xff]
    %v1689 = vld [vmem:[#allocation4 + $0x1f0] sm:$0xff]
    %v1690 = vld [vmem:[#allocation4 + $0x1f8] sm:$0xff]
    %v1691 = vld [vmem:[#allocation4 + $0x200] sm:$0xff]
    %v1692 = vld [vmem:[#allocation4 + $0x208] sm:$0xff]
    %v1693 = vld [vmem:[#allocation4 + $0x210] sm:$0xff]
    %v1694 = vld [vmem:[#allocation4 + $0x218] sm:$0xff]
    %v1695 = vld [vmem:[#allocation4 + $0x220] sm:$0xff]
    %v1696 = vld [vmem:[#allocation4 + $0x228] sm:$0xff]
    %v1697 = vld [vmem:[#allocation4 + $0x230] sm:$0xff]
    %v1698 = vld [vmem:[#allocation4 + $0x238] sm:$0xff]
    %v1699 = vld [vmem:[#allocation4 + $0x240] sm:$0xff]
    %v1700 = vld [vmem:[#allocation4 + $0x248] sm:$0xff]
    %v1701 = vld [vmem:[#allocation4 + $0x250] sm:$0xff]
    %v1702 = vld [vmem:[#allocation4 + $0x258] sm:$0xff]
    %v1703 = vld [vmem:[#allocation4 + $0x260] sm:$0xff]
    %v1704 = vld [vmem:[#allocation4 + $0x268] sm:$0xff]
    %v1705 = vld [vmem:[#allocation4 + $0x270] sm:$0xff]
    %v1706 = vld [vmem:[#allocation4 + $0x278] sm:$0xff]
    %v1707 = vld [vmem:[#allocation4 + $0x280] sm:$0xff]
    %v1708 = vld [vmem:[#allocation4 + $0x288] sm:$0xff]
    %v1709 = vld [vmem:[#allocation4 + $0x290] sm:$0xff]
    %v1710 = vld [vmem:[#allocation4 + $0x298] sm:$0xff]
    %v1711 = vld [vmem:[#allocation4 + $0x2a0] sm:$0xff]
    %v1712 = vld [vmem:[#allocation4 + $0x2a8] sm:$0xff]
    %v1713 = vld [vmem:[#allocation4 + $0x2b0] sm:$0xff]
    %v1714 = vld [vmem:[#allocation4 + $0x2b8] sm:$0xff]
    %v1715 = vld [vmem:[#allocation4 + $0x2c0] sm:$0xff]
    %v1716 = vld [vmem:[#allocation4 + $0x2c8] sm:$0xff]
    %v1717 = vld [vmem:[#allocation4 + $0x2d0] sm:$0xff]
    %v1718 = vld [vmem:[#allocation4 + $0x2d8] sm:$0xff]
    %v1719 = vld [vmem:[#allocation4 + $0x2e0] sm:$0xff]
    %v1720 = vld [vmem:[#allocation4 + $0x2e8] sm:$0xff]
    %v1721 = vld [vmem:[#allocation4 + $0x2f0] sm:$0xff]
    %v1722 = vld [vmem:[#allocation4 + $0x2f8] sm:$0xff]
    %v1723 = vld [vmem:[#allocation4 + $0x300] sm:$0xff]
    %v1724 = vld [vmem:[#allocation4 + $0x308] sm:$0xff]
    %v1725 = vld [vmem:[#allocation4 + $0x310] sm:$0xff]
    %v1726 = vld [vmem:[#allocation4 + $0x318] sm:$0xff]
    %v1727 = vld [vmem:[#allocation4 + $0x320] sm:$0xff]
    %v1728 = vld [vmem:[#allocation4 + $0x328] sm:$0xff]
    %v1729 = vld [vmem:[#allocation4 + $0x330] sm:$0xff]
    %v1730 = vld [vmem:[#allocation4 + $0x338] sm:$0xff]
    %v1731 = vld [vmem:[#allocation4 + $0x340] sm:$0xff]
    %v1732 = vld [vmem:[#allocation4 + $0x348] sm:$0xff]
    %v1733 = vld [vmem:[#allocation4 + $0x350] sm:$0xff]
    %v1734 = vld [vmem:[#allocation4 + $0x358] sm:$0xff]
    %v1735 = vld [vmem:[#allocation4 + $0x360] sm:$0xff]
    %v1736 = vld [vmem:[#allocation4 + $0x368] sm:$0xff]
    %v1737 = vld [vmem:[#allocation4 + $0x370] sm:$0xff]
    %v1738 = vld [vmem:[#allocation4 + $0x378] sm:$0xff]
    %v1739 = vld [vmem:[#allocation4 + $0x380] sm:$0xff]
    %v1740 = vld [vmem:[#allocation4 + $0x388] sm:$0xff]
    %v1741 = vld [vmem:[#allocation4 + $0x390] sm:$0xff]
    %v1742 = vld [vmem:[#allocation4 + $0x398] sm:$0xff]
    %v1743 = vld [vmem:[#allocation4 + $0x3a0] sm:$0xff]
    %v1744 = vld [vmem:[#allocation4 + $0x3a8] sm:$0xff]
    %v1745 = vld [vmem:[#allocation4 + $0x3b0] sm:$0xff]
    %v1746 = vld [vmem:[#allocation4 + $0x3b8] sm:$0xff]
    %v1747 = vld [vmem:[#allocation4 + $0x3c0] sm:$0xff]
    %v1748 = vld [vmem:[#allocation4 + $0x3c8] sm:$0xff]
    %v1749 = vld [vmem:[#allocation4 + $0x3d0] sm:$0xff]
    %v1750 = vld [vmem:[#allocation4 + $0x3d8] sm:$0xff]
    %v1751 = vld [vmem:[#allocation4 + $0x3e0] sm:$0xff]
    %v1752 = vld [vmem:[#allocation4 + $0x3e8] sm:$0xff]
    %v1753 = vld [vmem:[#allocation4 + $0x3f0] sm:$0xff]
    %v1754 = vld [vmem:[#allocation4 + $0x3f8] sm:$0xff]
    %v1883 = vunpack.c.l.b16 %v1627
    %v1884 = vunpack.c.h.b16 %v1627
    %v1885 = vunpack.c.l.b16 %v1628
    %v1886 = vunpack.c.h.b16 %v1628
    %v1887 = vunpack.c.l.b16 %v1629
    %v1888 = vunpack.c.h.b16 %v1629
    %v1889 = vunpack.c.l.b16 %v1630
    %v1890 = vunpack.c.h.b16 %v1630
    %v1891 = vunpack.c.l.b16 %v1631
    %v1892 = vunpack.c.h.b16 %v1631
    %v1893 = vunpack.c.l.b16 %v1632
    %v1894 = vunpack.c.h.b16 %v1632
    %v1895 = vunpack.c.l.b16 %v1633
    %v1896 = vunpack.c.h.b16 %v1633
    %v1897 = vunpack.c.l.b16 %v1634
    %v1898 = vunpack.c.h.b16 %v1634
    %v1899 = vunpack.c.l.b16 %v1635
    %v1900 = vunpack.c.h.b16 %v1635
    %v1901 = vunpack.c.l.b16 %v1636
    %v1902 = vunpack.c.h.b16 %v1636
    %v1903 = vunpack.c.l.b16 %v1637
    %v1904 = vunpack.c.h.b16 %v1637
    %v1905 = vunpack.c.l.b16 %v1638
    %v1906 = vunpack.c.h.b16 %v1638
    %v1907 = vunpack.c.l.b16 %v1639
    %v1908 = vunpack.c.h.b16 %v1639
    %v1909 = vunpack.c.l.b16 %v1640
    %v1910 = vunpack.c.h.b16 %v1640
    %v1911 = vunpack.c.l.b16 %v1641
    %v1912 = vunpack.c.h.b16 %v1641
    %v1913 = vunpack.c.l.b16 %v1642
    %v1914 = vunpack.c.h.b16 %v1642
    %v1915 = vunpack.c.l.b16 %v1643
    %v1916 = vunpack.c.h.b16 %v1643
    %v1917 = vunpack.c.l.b16 %v1644
    %v1918 = vunpack.c.h.b16 %v1644
    %v1919 = vunpack.c.l.b16 %v1645
    %v1920 = vunpack.c.h.b16 %v1645
    %v1921 = vunpack.c.l.b16 %v1646
    %v1922 = vunpack.c.h.b16 %v1646
    %v1923 = vunpack.c.l.b16 %v1647
    %v1924 = vunpack.c.h.b16 %v1647
    %v1925 = vunpack.c.l.b16 %v1648
    %v1926 = vunpack.c.h.b16 %v1648
    %v1927 = vunpack.c.l.b16 %v1649
    %v1928 = vunpack.c.h.b16 %v1649
    %v1929 = vunpack.c.l.b16 %v1650
    %v1930 = vunpack.c.h.b16 %v1650
    %v1931 = vunpack.c.l.b16 %v1651
    %v1932 = vunpack.c.h.b16 %v1651
    %v1933 = vunpack.c.l.b16 %v1652
    %v1934 = vunpack.c.h.b16 %v1652
    %v1935 = vunpack.c.l.b16 %v1653
    %v1936 = vunpack.c.h.b16 %v1653
    %v1937 = vunpack.c.l.b16 %v1654
    %v1938 = vunpack.c.h.b16 %v1654
    %v1939 = vunpack.c.l.b16 %v1655
    %v1940 = vunpack.c.h.b16 %v1655
    %v1941 = vunpack.c.l.b16 %v1656
    %v1942 = vunpack.c.h.b16 %v1656
    %v1943 = vunpack.c.l.b16 %v1657
    %v1944 = vunpack.c.h.b16 %v1657
    %v1945 = vunpack.c.l.b16 %v1658
    %v1946 = vunpack.c.h.b16 %v1658
    %v1947 = vunpack.c.l.b16 %v1659
    %v1948 = vunpack.c.h.b16 %v1659
    %v1949 = vunpack.c.l.b16 %v1660
    %v1950 = vunpack.c.h.b16 %v1660
    %v1951 = vunpack.c.l.b16 %v1661
    %v1952 = vunpack.c.h.b16 %v1661
    %v1953 = vunpack.c.l.b16 %v1662
    %v1954 = vunpack.c.h.b16 %v1662
    %v1955 = vunpack.c.l.b16 %v1663
    %v1956 = vunpack.c.h.b16 %v1663
    %v1957 = vunpack.c.l.b16 %v1664
    %v1958 = vunpack.c.h.b16 %v1664
    %v1959 = vunpack.c.l.b16 %v1665
    %v1960 = vunpack.c.h.b16 %v1665
    %v1961 = vunpack.c.l.b16 %v1666
    %v1962 = vunpack.c.h.b16 %v1666
    %v1963 = vunpack.c.l.b16 %v1667
    %v1964 = vunpack.c.h.b16 %v1667
    %v1965 = vunpack.c.l.b16 %v1668
    %v1966 = vunpack.c.h.b16 %v1668
    %v1967 = vunpack.c.l.b16 %v1669
    %v1968 = vunpack.c.h.b16 %v1669
    %v1969 = vunpack.c.l.b16 %v1670
    %v1970 = vunpack.c.h.b16 %v1670
    %v1971 = vunpack.c.l.b16 %v1671
    %v1972 = vunpack.c.h.b16 %v1671
    %v1973 = vunpack.c.l.b16 %v1672
    %v1974 = vunpack.c.h.b16 %v1672
    %v1975 = vunpack.c.l.b16 %v1673
    %v1976 = vunpack.c.h.b16 %v1673
    %v1977 = vunpack.c.l.b16 %v1674
    %v1978 = vunpack.c.h.b16 %v1674
    %v1979 = vunpack.c.l.b16 %v1675
    %v1980 = vunpack.c.h.b16 %v1675
    %v1981 = vunpack.c.l.b16 %v1676
    %v1982 = vunpack.c.h.b16 %v1676
    %v1983 = vunpack.c.l.b16 %v1677
    %v1984 = vunpack.c.h.b16 %v1677
    %v1985 = vunpack.c.l.b16 %v1678
    %v1986 = vunpack.c.h.b16 %v1678
    %v1987 = vunpack.c.l.b16 %v1679
    %v1988 = vunpack.c.h.b16 %v1679
    %v1989 = vunpack.c.l.b16 %v1680
    %v1990 = vunpack.c.h.b16 %v1680
    %v1991 = vunpack.c.l.b16 %v1681
    %v1992 = vunpack.c.h.b16 %v1681
    %v1993 = vunpack.c.l.b16 %v1682
    %v1994 = vunpack.c.h.b16 %v1682
    %v1995 = vunpack.c.l.b16 %v1683
    %v1996 = vunpack.c.h.b16 %v1683
    %v1997 = vunpack.c.l.b16 %v1684
    %v1998 = vunpack.c.h.b16 %v1684
    %v1999 = vunpack.c.l.b16 %v1685
    %v2000 = vunpack.c.h.b16 %v1685
    %v2001 = vunpack.c.l.b16 %v1686
    %v2002 = vunpack.c.h.b16 %v1686
    %v2003 = vunpack.c.l.b16 %v1687
    %v2004 = vunpack.c.h.b16 %v1687
    %v2005 = vunpack.c.l.b16 %v1688
    %v2006 = vunpack.c.h.b16 %v1688
    %v2007 = vunpack.c.l.b16 %v1689
    %v2008 = vunpack.c.h.b16 %v1689
    %v2009 = vunpack.c.l.b16 %v1690
    %v2010 = vunpack.c.h.b16 %v1690
    %v2011 = vunpack.c.l.b16 %v1691
    %v2012 = vunpack.c.h.b16 %v1691
    %v2013 = vunpack.c.l.b16 %v1692
    %v2014 = vunpack.c.h.b16 %v1692
    %v2015 = vunpack.c.l.b16 %v1693
    %v2016 = vunpack.c.h.b16 %v1693
    %v2017 = vunpack.c.l.b16 %v1694
    %v2018 = vunpack.c.h.b16 %v1694
    %v2019 = vunpack.c.l.b16 %v1695
    %v2020 = vunpack.c.h.b16 %v1695
    %v2021 = vunpack.c.l.b16 %v1696
    %v2022 = vunpack.c.h.b16 %v1696
    %v2023 = vunpack.c.l.b16 %v1697
    %v2024 = vunpack.c.h.b16 %v1697
    %v2025 = vunpack.c.l.b16 %v1698
    %v2026 = vunpack.c.h.b16 %v1698
    %v2027 = vunpack.c.l.b16 %v1699
    %v2028 = vunpack.c.h.b16 %v1699
    %v2029 = vunpack.c.l.b16 %v1700
    %v2030 = vunpack.c.h.b16 %v1700
    %v2031 = vunpack.c.l.b16 %v1701
    %v2032 = vunpack.c.h.b16 %v1701
    %v2033 = vunpack.c.l.b16 %v1702
    %v2034 = vunpack.c.h.b16 %v1702
    %v2035 = vunpack.c.l.b16 %v1703
    %v2036 = vunpack.c.h.b16 %v1703
    %v2037 = vunpack.c.l.b16 %v1704
    %v2038 = vunpack.c.h.b16 %v1704
    %v2039 = vunpack.c.l.b16 %v1705
    %v2040 = vunpack.c.h.b16 %v1705
    %v2041 = vunpack.c.l.b16 %v1706
    %v2042 = vunpack.c.h.b16 %v1706
    %v2043 = vunpack.c.l.b16 %v1707
    %v2044 = vunpack.c.h.b16 %v1707
    %v2045 = vunpack.c.l.b16 %v1708
    %v2046 = vunpack.c.h.b16 %v1708
    %v2047 = vunpack.c.l.b16 %v1709
    %v2048 = vunpack.c.h.b16 %v1709
    %v2049 = vunpack.c.l.b16 %v1710
    %v2050 = vunpack.c.h.b16 %v1710
    %v2051 = vunpack.c.l.b16 %v1711
    %v2052 = vunpack.c.h.b16 %v1711
    %v2053 = vunpack.c.l.b16 %v1712
    %v2054 = vunpack.c.h.b16 %v1712
    %v2055 = vunpack.c.l.b16 %v1713
    %v2056 = vunpack.c.h.b16 %v1713
    %v2057 = vunpack.c.l.b16 %v1714
    %v2058 = vunpack.c.h.b16 %v1714
    %v2059 = vunpack.c.l.b16 %v1715
    %v2060 = vunpack.c.h.b16 %v1715
    %v2061 = vunpack.c.l.b16 %v1716
    %v2062 = vunpack.c.h.b16 %v1716
    %v2063 = vunpack.c.l.b16 %v1717
    %v2064 = vunpack.c.h.b16 %v1717
    %v2065 = vunpack.c.l.b16 %v1718
    %v2066 = vunpack.c.h.b16 %v1718
    %v2067 = vunpack.c.l.b16 %v1719
    %v2068 = vunpack.c.h.b16 %v1719
    %v2069 = vunpack.c.l.b16 %v1720
    %v2070 = vunpack.c.h.b16 %v1720
    %v2071 = vunpack.c.l.b16 %v1721
    %v2072 = vunpack.c.h.b16 %v1721
    %v2073 = vunpack.c.l.b16 %v1722
    %v2074 = vunpack.c.h.b16 %v1722
    %v2075 = vunpack.c.l.b16 %v1723
    %v2076 = vunpack.c.h.b16 %v1723
    %v2077 = vunpack.c.l.b16 %v1724
    %v2078 = vunpack.c.h.b16 %v1724
    %v2079 = vunpack.c.l.b16 %v1725
    %v2080 = vunpack.c.h.b16 %v1725
    %v2081 = vunpack.c.l.b16 %v1726
    %v2082 = vunpack.c.h.b16 %v1726
    %v2083 = vunpack.c.l.b16 %v1727
    %v2084 = vunpack.c.h.b16 %v1727
    %v2085 = vunpack.c.l.b16 %v1728
    %v2086 = vunpack.c.h.b16 %v1728
    %v2087 = vunpack.c.l.b16 %v1729
    %v2088 = vunpack.c.h.b16 %v1729
    %v2089 = vunpack.c.l.b16 %v1730
    %v2090 = vunpack.c.h.b16 %v1730
    %v2091 = vunpack.c.l.b16 %v1731
    %v2092 = vunpack.c.h.b16 %v1731
    %v2093 = vunpack.c.l.b16 %v1732
    %v2094 = vunpack.c.h.b16 %v1732
    %v2095 = vunpack.c.l.b16 %v1733
    %v2096 = vunpack.c.h.b16 %v1733
    %v2097 = vunpack.c.l.b16 %v1734
    %v2098 = vunpack.c.h.b16 %v1734
    %v2099 = vunpack.c.l.b16 %v1735
    %v2100 = vunpack.c.h.b16 %v1735
    %v2101 = vunpack.c.l.b16 %v1736
    %v2102 = vunpack.c.h.b16 %v1736
    %v2103 = vunpack.c.l.b16 %v1737
    %v2104 = vunpack.c.h.b16 %v1737
    %v2105 = vunpack.c.l.b16 %v1738
    %v2106 = vunpack.c.h.b16 %v1738
    %v2107 = vunpack.c.l.b16 %v1739
    %v2108 = vunpack.c.h.b16 %v1739
    %v2109 = vunpack.c.l.b16 %v1740
    %v2110 = vunpack.c.h.b16 %v1740
    %v2111 = vunpack.c.l.b16 %v1741
    %v2112 = vunpack.c.h.b16 %v1741
    %v2113 = vunpack.c.l.b16 %v1742
    %v2114 = vunpack.c.h.b16 %v1742
    %v2115 = vunpack.c.l.b16 %v1743
    %v2116 = vunpack.c.h.b16 %v1743
    %v2117 = vunpack.c.l.b16 %v1744
    %v2118 = vunpack.c.h.b16 %v1744
    %v2119 = vunpack.c.l.b16 %v1745
    %v2120 = vunpack.c.h.b16 %v1745
    %v2121 = vunpack.c.l.b16 %v1746
    %v2122 = vunpack.c.h.b16 %v1746
    %v2123 = vunpack.c.l.b16 %v1747
    %v2124 = vunpack.c.h.b16 %v1747
    %v2125 = vunpack.c.l.b16 %v1748
    %v2126 = vunpack.c.h.b16 %v1748
    %v2127 = vunpack.c.l.b16 %v1749
    %v2128 = vunpack.c.h.b16 %v1749
    %v2129 = vunpack.c.l.b16 %v1750
    %v2130 = vunpack.c.h.b16 %v1750
    %v2131 = vunpack.c.l.b16 %v1751
    %v2132 = vunpack.c.h.b16 %v1751
    %v2133 = vunpack.c.l.b16 %v1752
    %v2134 = vunpack.c.h.b16 %v1752
    %v2135 = vunpack.c.l.b16 %v1753
    %v2136 = vunpack.c.h.b16 %v1753
    %v2137 = vunpack.c.l.b16 %v1754
    %v2138 = vunpack.c.h.b16 %v1754
    %v2139 = vpack.c.b16 %v1887, %v1883
    %v2140 = vpack.c.b16 %v1888, %v1884
    %v2141 = vpack.c.b16 %v1889, %v1885
    %v2142 = vpack.c.b16 %v1890, %v1886
    %v2143 = vpack.c.b16 %v1895, %v1891
    %v2144 = vpack.c.b16 %v1896, %v1892
    %v2145 = vpack.c.b16 %v1897, %v1893
    %v2146 = vpack.c.b16 %v1898, %v1894
    %v2147 = vpack.c.b16 %v1903, %v1899
    %v2148 = vpack.c.b16 %v1904, %v1900
    %v2149 = vpack.c.b16 %v1905, %v1901
    %v2150 = vpack.c.b16 %v1906, %v1902
    %v2151 = vpack.c.b16 %v1911, %v1907
    %v2152 = vpack.c.b16 %v1912, %v1908
    %v2153 = vpack.c.b16 %v1913, %v1909
    %v2154 = vpack.c.b16 %v1914, %v1910
    %v2155 = vpack.c.b16 %v1919, %v1915
    %v2156 = vpack.c.b16 %v1920, %v1916
    %v2157 = vpack.c.b16 %v1921, %v1917
    %v2158 = vpack.c.b16 %v1922, %v1918
    %v2159 = vpack.c.b16 %v1927, %v1923
    %v2160 = vpack.c.b16 %v1928, %v1924
    %v2161 = vpack.c.b16 %v1929, %v1925
    %v2162 = vpack.c.b16 %v1930, %v1926
    %v2163 = vpack.c.b16 %v1935, %v1931
    %v2164 = vpack.c.b16 %v1936, %v1932
    %v2165 = vpack.c.b16 %v1937, %v1933
    %v2166 = vpack.c.b16 %v1938, %v1934
    %v2167 = vpack.c.b16 %v1943, %v1939
    %v2168 = vpack.c.b16 %v1944, %v1940
    %v2169 = vpack.c.b16 %v1945, %v1941
    %v2170 = vpack.c.b16 %v1946, %v1942
    %v2171 = vpack.c.b16 %v1951, %v1947
    %v2172 = vpack.c.b16 %v1952, %v1948
    %v2173 = vpack.c.b16 %v1953, %v1949
    %v2174 = vpack.c.b16 %v1954, %v1950
    %v2175 = vpack.c.b16 %v1959, %v1955
    %v2176 = vpack.c.b16 %v1960, %v1956
    %v2177 = vpack.c.b16 %v1961, %v1957
    %v2178 = vpack.c.b16 %v1962, %v1958
    %v2179 = vpack.c.b16 %v1967, %v1963
    %v2180 = vpack.c.b16 %v1968, %v1964
    %v2181 = vpack.c.b16 %v1969, %v1965
    %v2182 = vpack.c.b16 %v1970, %v1966
    %v2183 = vpack.c.b16 %v1975, %v1971
    %v2184 = vpack.c.b16 %v1976, %v1972
    %v2185 = vpack.c.b16 %v1977, %v1973
    %v2186 = vpack.c.b16 %v1978, %v1974
    %v2187 = vpack.c.b16 %v1983, %v1979
    %v2188 = vpack.c.b16 %v1984, %v1980
    %v2189 = vpack.c.b16 %v1985, %v1981
    %v2190 = vpack.c.b16 %v1986, %v1982
    %v2191 = vpack.c.b16 %v1991, %v1987
    %v2192 = vpack.c.b16 %v1992, %v1988
    %v2193 = vpack.c.b16 %v1993, %v1989
    %v2194 = vpack.c.b16 %v1994, %v1990
    %v2195 = vpack.c.b16 %v1999, %v1995
    %v2196 = vpack.c.b16 %v2000, %v1996
    %v2197 = vpack.c.b16 %v2001, %v1997
    %v2198 = vpack.c.b16 %v2002, %v1998
    %v2199 = vpack.c.b16 %v2007, %v2003
    %v2200 = vpack.c.b16 %v2008, %v2004
    %v2201 = vpack.c.b16 %v2009, %v2005
    %v2202 = vpack.c.b16 %v2010, %v2006
    %v2203 = vpack.c.b16 %v2015, %v2011
    %v2204 = vpack.c.b16 %v2016, %v2012
    %v2205 = vpack.c.b16 %v2017, %v2013
    %v2206 = vpack.c.b16 %v2018, %v2014
    %v2207 = vpack.c.b16 %v2023, %v2019
    %v2208 = vpack.c.b16 %v2024, %v2020
    %v2209 = vpack.c.b16 %v2025, %v2021
    %v2210 = vpack.c.b16 %v2026, %v2022
    %v2211 = vpack.c.b16 %v2031, %v2027
    %v2212 = vpack.c.b16 %v2032, %v2028
    %v2213 = vpack.c.b16 %v2033, %v2029
    %v2214 = vpack.c.b16 %v2034, %v2030
    %v2215 = vpack.c.b16 %v2039, %v2035
    %v2216 = vpack.c.b16 %v2040, %v2036
    %v2217 = vpack.c.b16 %v2041, %v2037
    %v2218 = vpack.c.b16 %v2042, %v2038
    %v2219 = vpack.c.b16 %v2047, %v2043
    %v2220 = vpack.c.b16 %v2048, %v2044
    %v2221 = vpack.c.b16 %v2049, %v2045
    %v2222 = vpack.c.b16 %v2050, %v2046
    %v2223 = vpack.c.b16 %v2055, %v2051
    %v2224 = vpack.c.b16 %v2056, %v2052
    %v2225 = vpack.c.b16 %v2057, %v2053
    %v2226 = vpack.c.b16 %v2058, %v2054
    %v2227 = vpack.c.b16 %v2063, %v2059
    %v2228 = vpack.c.b16 %v2064, %v2060
    %v2229 = vpack.c.b16 %v2065, %v2061
    %v2230 = vpack.c.b16 %v2066, %v2062
    %v2231 = vpack.c.b16 %v2071, %v2067
    %v2232 = vpack.c.b16 %v2072, %v2068
    %v2233 = vpack.c.b16 %v2073, %v2069
    %v2234 = vpack.c.b16 %v2074, %v2070
    %v2235 = vpack.c.b16 %v2079, %v2075
    %v2236 = vpack.c.b16 %v2080, %v2076
    %v2237 = vpack.c.b16 %v2081, %v2077
    %v2238 = vpack.c.b16 %v2082, %v2078
    %v2239 = vpack.c.b16 %v2087, %v2083
    %v2240 = vpack.c.b16 %v2088, %v2084
    %v2241 = vpack.c.b16 %v2089, %v2085
    %v2242 = vpack.c.b16 %v2090, %v2086
    %v2243 = vpack.c.b16 %v2095, %v2091
    %v2244 = vpack.c.b16 %v2096, %v2092
    %v2245 = vpack.c.b16 %v2097, %v2093
    %v2246 = vpack.c.b16 %v2098, %v2094
    %v2247 = vpack.c.b16 %v2103, %v2099
    %v2248 = vpack.c.b16 %v2104, %v2100
    %v2249 = vpack.c.b16 %v2105, %v2101
    %v2250 = vpack.c.b16 %v2106, %v2102
    %v2251 = vpack.c.b16 %v2111, %v2107
    %v2252 = vpack.c.b16 %v2112, %v2108
    %v2253 = vpack.c.b16 %v2113, %v2109
    %v2254 = vpack.c.b16 %v2114, %v2110
    %v2255 = vpack.c.b16 %v2119, %v2115
    %v2256 = vpack.c.b16 %v2120, %v2116
    %v2257 = vpack.c.b16 %v2121, %v2117
    %v2258 = vpack.c.b16 %v2122, %v2118
    %v2259 = vpack.c.b16 %v2127, %v2123
    %v2260 = vpack.c.b16 %v2128, %v2124
    %v2261 = vpack.c.b16 %v2129, %v2125
    %v2262 = vpack.c.b16 %v2130, %v2126
    %v2263 = vpack.c.b16 %v2135, %v2131
    %v2264 = vpack.c.b16 %v2136, %v2132
    %v2265 = vpack.c.b16 %v2137, %v2133
    %v2266 = vpack.c.b16 %v2138, %v2134
    %2395 = vmatprep.subr.bf16.mxu0 %v2168
    %2396 = vmatpush1.bf16.msra.mxu0 %v2167
    %2397 = vmatprep.subr.bf16.mxu0 %v2164
    %2398 = vmatpush1.bf16.msra.mxu0 %v2163
    %2399 = vmatprep.subr.bf16.mxu0 %v2160
    %2400 = vmatpush1.bf16.msra.mxu0 %v2159
    %2401 = vmatprep.subr.bf16.mxu0 %v2156
    %2402 = vmatpush1.bf16.msra.mxu0 %v2155
    %2403 = vmatprep.subr.bf16.mxu0 %v2152
    %2404 = vmatpush1.bf16.msra.mxu0 %v2151
    %2405 = vmatprep.subr.bf16.mxu0 %v2148
    %2406 = vmatpush1.bf16.msra.mxu0 %v2147
    %2407 = vmatprep.subr.bf16.mxu0 %v2144
    %2408 = vmatpush1.bf16.msra.mxu0 %v2143
    %2409 = vmatprep.subr.bf16.mxu0 %v2140
    %2410 = vmatpush1.bf16.msra.mxu0 %v2139
    %2411 = vmatprep.subr.bf16.mxu0 %v2200
    %2412 = vmatpush2.bf16.msra.mxu0 %v2199
    %2413 = vmatprep.subr.bf16.mxu0 %v2196
    %2414 = vmatpush2.bf16.msra.mxu0 %v2195
    %2415 = vmatprep.subr.bf16.mxu0 %v2192
    %2416 = vmatpush2.bf16.msra.mxu0 %v2191
    %2417 = vmatprep.subr.bf16.mxu0 %v2188
    %2418 = vmatpush2.bf16.msra.mxu0 %v2187
    %2419 = vmatprep.subr.bf16.mxu0 %v2184
    %2420 = vmatpush2.bf16.msra.mxu0 %v2183
    %2421 = vmatprep.subr.bf16.mxu0 %v2180
    %2422 = vmatpush2.bf16.msra.mxu0 %v2179
    %2423 = vmatprep.subr.bf16.mxu0 %v2176
    %2424 = vmatpush2.bf16.msra.mxu0 %v2175
    %2425 = vmatprep.subr.bf16.mxu0 %v2172
    %2426 = vmatpush2.bf16.msra.mxu0 %v2171
    %2427 = vmatprep.mubr.bf16.mxu0 %v1624
    %2428 = vmatmul.mubr.bf16.gmra.mxu0 %v1623
    %v2429 = vpop.f32.mrf.mxu0
    %v2430 = vadd.f32 0.0, %v2429
    %v2431 = vpop.f32.mrf.mxu0
    %v2432 = vadd.f32 0.0, %v2431
    %v2433 = vpop.f32.mrf.mxu0
    %v2434 = vpop.f32.mrf.mxu0
    %2435 = vdwg.mxu0
    %2436 = vmatprep.subr.bf16.mxu0 %v2232
    %2437 = vmatpush1.bf16.msra.mxu0 %v2231
    %2438 = vmatprep.subr.bf16.mxu0 %v2228
    %2439 = vmatpush1.bf16.msra.mxu0 %v2227
    %2440 = vmatprep.subr.bf16.mxu0 %v2224
    %2441 = vmatpush1.bf16.msra.mxu0 %v2223
    %2442 = vmatprep.subr.bf16.mxu0 %v2220
    %2443 = vmatpush1.bf16.msra.mxu0 %v2219
    %2444 = vmatprep.subr.bf16.mxu0 %v2216
    %2445 = vmatpush1.bf16.msra.mxu0 %v2215
    %2446 = vmatprep.subr.bf16.mxu0 %v2212
    %2447 = vmatpush1.bf16.msra.mxu0 %v2211
    %2448 = vmatprep.subr.bf16.mxu0 %v2208
    %2449 = vmatpush1.bf16.msra.mxu0 %v2207
    %2450 = vmatprep.subr.bf16.mxu0 %v2204
    %2451 = vmatpush1.bf16.msra.mxu0 %v2203
    %2452 = vmatprep.subr.bf16.mxu0 %v2264
    %2453 = vmatpush2.bf16.msra.mxu0 %v2263
    %2454 = vmatprep.subr.bf16.mxu0 %v2260
    %2455 = vmatpush2.bf16.msra.mxu0 %v2259
    %2456 = vmatprep.subr.bf16.mxu0 %v2256
    %2457 = vmatpush2.bf16.msra.mxu0 %v2255
    %2458 = vmatprep.subr.bf16.mxu0 %v2252
    %2459 = vmatpush2.bf16.msra.mxu0 %v2251
    %2460 = vmatprep.subr.bf16.mxu0 %v2248
    %2461 = vmatpush2.bf16.msra.mxu0 %v2247
    %2462 = vmatprep.subr.bf16.mxu0 %v2244
    %2463 = vmatpush2.bf16.msra.mxu0 %v2243
    %2464 = vmatprep.subr.bf16.mxu0 %v2240
    %2465 = vmatpush2.bf16.msra.mxu0 %v2239
    %2466 = vmatprep.subr.bf16.mxu0 %v2236
    %2467 = vmatpush2.bf16.msra.mxu0 %v2235
    %2468 = vmatprep.mubr.bf16.mxu0 %v1626
    %2469 = vmatmul.mubr.bf16.gmra.mxu0 %v1625
    %v2470 = vpop.f32.mrf.mxu0
    %v2471 = vadd.f32 %v2430, %v2470
    %v2472 = vpop.f32.mrf.mxu0
    %v2473 = vadd.f32 %v2432, %v2472
    %v2474 = vpop.f32.mrf.mxu0
    %v2475 = vpop.f32.mrf.mxu0
    %2476 = vdwg.mxu0
    %2477 = vmatprep.subr.bf16.mxu0 %v2170
    %2478 = vmatpush1.bf16.msra.mxu0 %v2169
    %2479 = vmatprep.subr.bf16.mxu0 %v2166
    %2480 = vmatpush1.bf16.msra.mxu0 %v2165
    %2481 = vmatprep.subr.bf16.mxu0 %v2162
    %2482 = vmatpush1.bf16.msra.mxu0 %v2161
    %2483 = vmatprep.subr.bf16.mxu0 %v2158
    %2484 = vmatpush1.bf16.msra.mxu0 %v2157
    %2485 = vmatprep.subr.bf16.mxu0 %v2154
    %2486 = vmatpush1.bf16.msra.mxu0 %v2153
    %2487 = vmatprep.subr.bf16.mxu0 %v2150
    %2488 = vmatpush1.bf16.msra.mxu0 %v2149
    %2489 = vmatprep.subr.bf16.mxu0 %v2146
    %2490 = vmatpush1.bf16.msra.mxu0 %v2145
    %2491 = vmatprep.subr.bf16.mxu0 %v2142
    %2492 = vmatpush1.bf16.msra.mxu0 %v2141
    %2493 = vmatprep.subr.bf16.mxu0 %v2202
    %2494 = vmatpush2.bf16.msra.mxu0 %v2201
    %2495 = vmatprep.subr.bf16.mxu0 %v2198
    %2496 = vmatpush2.bf16.msra.mxu0 %v2197
    %2497 = vmatprep.subr.bf16.mxu0 %v2194
    %2498 = vmatpush2.bf16.msra.mxu0 %v2193
    %2499 = vmatprep.subr.bf16.mxu0 %v2190
    %2500 = vmatpush2.bf16.msra.mxu0 %v2189
    %2501 = vmatprep.subr.bf16.mxu0 %v2186
    %2502 = vmatpush2.bf16.msra.mxu0 %v2185
    %2503 = vmatprep.subr.bf16.mxu0 %v2182
    %2504 = vmatpush2.bf16.msra.mxu0 %v2181
    %2505 = vmatprep.subr.bf16.mxu0 %v2178
    %2506 = vmatpush2.bf16.msra.mxu0 %v2177
    %2507 = vmatprep.subr.bf16.mxu0 %v2174
    %2508 = vmatpush2.bf16.msra.mxu0 %v2173
    %2509 = vmatprep.mubr.bf16.mxu0 %v1624
    %2510 = vmatmul.mubr.bf16.gmra.mxu0 %v1623
    %v2511 = vpop.f32.mrf.mxu0
    %v2512 = vadd.f32 0.0, %v2511
    %v2513 = vpop.f32.mrf.mxu0
    %v2514 = vadd.f32 0.0, %v2513
    %v2515 = vpop.f32.mrf.mxu0
    %v2516 = vpop.f32.mrf.mxu0
    %2517 = vdwg.mxu0
    %2518 = vmatprep.subr.bf16.mxu0 %v2234
    %2519 = vmatpush1.bf16.msra.mxu0 %v2233
    %2520 = vmatprep.subr.bf16.mxu0 %v2230
    %2521 = vmatpush1.bf16.msra.mxu0 %v2229
    %2522 = vmatprep.subr.bf16.mxu0 %v2226
    %2523 = vmatpush1.bf16.msra.mxu0 %v2225
    %2524 = vmatprep.subr.bf16.mxu0 %v2222
    %2525 = vmatpush1.bf16.msra.mxu0 %v2221
    %2526 = vmatprep.subr.bf16.mxu0 %v2218
    %2527 = vmatpush1.bf16.msra.mxu0 %v2217
    %2528 = vmatprep.subr.bf16.mxu0 %v2214
    %2529 = vmatpush1.bf16.msra.mxu0 %v2213
    %2530 = vmatprep.subr.bf16.mxu0 %v2210
    %2531 = vmatpush1.bf16.msra.mxu0 %v2209
    %2532 = vmatprep.subr.bf16.mxu0 %v2206
    %2533 = vmatpush1.bf16.msra.mxu0 %v2205
    %2534 = vmatprep.subr.bf16.mxu0 %v2266
    %2535 = vmatpush2.bf16.msra.mxu0 %v2265
    %2536 = vmatprep.subr.bf16.mxu0 %v2262
    %2537 = vmatpush2.bf16.msra.mxu0 %v2261
    %2538 = vmatprep.subr.bf16.mxu0 %v2258
    %2539 = vmatpush2.bf16.msra.mxu0 %v2257
    %2540 = vmatprep.subr.bf16.mxu0 %v2254
    %2541 = vmatpush2.bf16.msra.mxu0 %v2253
    %2542 = vmatprep.subr.bf16.mxu0 %v2250
    %2543 = vmatpush2.bf16.msra.mxu0 %v2249
    %2544 = vmatprep.subr.bf16.mxu0 %v2246
    %2545 = vmatpush2.bf16.msra.mxu0 %v2245
    %2546 = vmatprep.subr.bf16.mxu0 %v2242
    %2547 = vmatpush2.bf16.msra.mxu0 %v2241
    %2548 = vmatprep.subr.bf16.mxu0 %v2238
    %2549 = vmatpush2.bf16.msra.mxu0 %v2237
    %2550 = vmatprep.mubr.bf16.mxu0 %v1626
    %2551 = vmatmul.mubr.bf16.gmra.mxu0 %v1625
    %v2552 = vpop.f32.mrf.mxu0
    %v2553 = vadd.f32 %v2512, %v2552
    %v2554 = vpop.f32.mrf.mxu0
    %v2555 = vadd.f32 %v2514, %v2554
    %v2556 = vpop.f32.mrf.mxu0
    %v2557 = vpop.f32.mrf.mxu0
    %2558 = vdwg.mxu0
    %v2559 = vlaneseq
    %v2560 = vshrl.u32 %v2559, 7
    %vm2561 = vcmp.lt.s32.totalorder %v2560, 4
    %v2562 = vsel %vm2561, 1, 0
    %v2563 = vcvt.s32.f32 %v2562
    %v2564 = vmul.f32 %v2471, %v2563
    %v2565 = vmul.f32 %v2473, %v2563
    %v2566 = vmul.f32 %v2553, %v2563
    %v2567 = vmul.f32 %v2555, %v2563
    %v2568 = vrot.slane %v2564, 4
    %v2569 = vadd.f32 %v2564, %v2568
    %v2570 = vrot.slane %v2569, 2
    %v2571 = vadd.f32 %v2569, %v2570
    %v2572 = vrot.slane %v2571, 1
    %v2573 = vadd.f32 %v2571, %v2572
    %v2574 = vrot.slane %v2565, 4
    %v2575 = vadd.f32 %v2565, %v2574
    %v2576 = vrot.slane %v2575, 2
    %v2577 = vadd.f32 %v2575, %v2576
    %v2578 = vrot.slane %v2577, 1
    %v2579 = vadd.f32 %v2577, %v2578
    %v2580 = vrot.slane %v2566, 4
    %v2581 = vadd.f32 %v2566, %v2580
    %v2582 = vrot.slane %v2581, 2
    %v2583 = vadd.f32 %v2581, %v2582
    %v2584 = vrot.slane %v2583, 1
    %v2585 = vadd.f32 %v2583, %v2584
    %v2586 = vrot.slane %v2567, 4
    %v2587 = vadd.f32 %v2567, %v2586
    %v2588 = vrot.slane %v2587, 2
    %v2589 = vadd.f32 %v2587, %v2588
    %v2590 = vrot.slane %v2589, 1
    %v2591 = vadd.f32 %v2589, %v2590
    %v2592 = vmul.f32 %v2573, 0.25
    %v2593 = vmul.f32 %v2579, 0.25
    %v2594 = vmul.f32 %v2585, 0.25
    %v2595 = vmul.f32 %v2591, 0.25
    %v2596 = vsub.f32 %v2471, %v2592
    %v2597 = vsub.f32 %v2473, %v2593
    %v2598 = vsub.f32 %v2553, %v2594
    %v2599 = vsub.f32 %v2555, %v2595
    %v2600 = vmul.f32 %v2596, %v2563
    %v2601 = vmul.f32 %v2597, %v2563
    %v2602 = vmul.f32 %v2598, %v2563
    %v2603 = vmul.f32 %v2599, %v2563
    %v2604 = vmul.f32 %v2600, %v2600
    %v2605 = vmul.f32 %v2601, %v2601
    %v2606 = vmul.f32 %v2602, %v2602
    %v2607 = vmul.f32 %v2603, %v2603
    %v2608 = vrot.slane %v2604, 4
    %v2609 = vadd.f32 %v2604, %v2608
    %v2610 = vrot.slane %v2609, 2
    %v2611 = vadd.f32 %v2609, %v2610
    %v2612 = vrot.slane %v2611, 1
    %v2613 = vadd.f32 %v2611, %v2612
    %v2614 = vrot.slane %v2605, 4
    %v2615 = vadd.f32 %v2605, %v2614
    %v2616 = vrot.slane %v2615, 2
    %v2617 = vadd.f32 %v2615, %v2616
    %v2618 = vrot.slane %v2617, 1
    %v2619 = vadd.f32 %v2617, %v2618
    %v2620 = vrot.slane %v2606, 4
    %v2621 = vadd.f32 %v2606, %v2620
    %v2622 = vrot.slane %v2621, 2
    %v2623 = vadd.f32 %v2621, %v2622
    %v2624 = vrot.slane %v2623, 1
    %v2625 = vadd.f32 %v2623, %v2624
    %v2626 = vrot.slane %v2607, 4
    %v2627 = vadd.f32 %v2607, %v2626
    %v2628 = vrot.slane %v2627, 2
    %v2629 = vadd.f32 %v2627, %v2628
    %v2630 = vrot.slane %v2629, 1
    %v2631 = vadd.f32 %v2629, %v2630
    %v2632 = vmul.f32 %v2613, 0.25
    %v2633 = vmul.f32 %v2619, 0.25
    %v2634 = vmul.f32 %v2625, 0.25
    %v2635 = vmul.f32 %v2631, 0.25
    %v2636 = vadd.f32 %v2632, 1e-05
    %v2637 = vadd.f32 %v2633, 1e-05
    %v2638 = vadd.f32 %v2634, 1e-05
    %v2639 = vadd.f32 %v2635, 1e-05
    %v2640 = vrsqrt.pop %v2636
    %v2641 = vrsqrt.pop %v2637
    %v2642 = vrsqrt.pop %v2638
    %v2643 = vrsqrt.pop %v2639
    %v2648 = vcombine.low %v2640, %v2641
    %v2649 = vcombine.low %v2642, %v2643
    %v2651 = vunpack.c.l.s4 1966171168
    %v2652 = vunpack.c.0.s8 %v2651
    %v2653 = vlaneseq
    %v2654 = vshrl.u32 %v2653, 7
    %v2655 = vsub.s32 %v2652, %v2654
    %v2656 = vrot.slane %v2648, %v2655
    %v2658 = vunpack.c.l.s4 1966171168
    %v2659 = vunpack.c.0.s8 %v2658
    %v2660 = vlaneseq
    %v2661 = vshrl.u32 %v2660, 7
    %v2662 = vsub.s32 %v2659, %v2661
    %v2663 = vrot.slane %v2649, %v2662
    %v2664 = vcombine.low %v2656, %v2663
    %v2666 = vunpack.c.l.s4 1966171168
    %v2667 = vunpack.c.0.s8 %v2666
    %v2668 = vlaneseq
    %v2669 = vshrl.u32 %v2668, 7
    %v2670 = vsub.s32 %v2667, %v2669
    %v2671 = vrot.slane %v2664, %v2670
    %v2673 = vmul.f32 %v54, %v2671
    %v2675 = vlaneseq
    %v2676 = vshrl.u32 %v2675, 7
    %v2677 = vsub.s32 0, %v2676
    %v2678 = vrot.slane %v2673, %v2677
    %v2679 = vlaneseq
    %v2680 = vshrl.u32 %v2679, 7
    %v2681 = vsub.s32 1, %v2680
    %v2682 = vrot.slane %v2673, %v2681
    %v2683 = vlaneseq
    %v2684 = vshrl.u32 %v2683, 7
    %v2685 = vsub.s32 2, %v2684
    %v2686 = vrot.slane %v2673, %v2685
    %v2687 = vlaneseq
    %v2688 = vshrl.u32 %v2687, 7
    %v2689 = vsub.s32 3, %v2688
    %v2690 = vrot.slane %v2673, %v2689
    %v2695 = vmul.f32 %v2596, %v2678
    %v2696 = vmul.f32 %v2597, %v2682
    %v2697 = vmul.f32 %v2598, %v2686
    %v2698 = vmul.f32 %v2599, %v2690
    %v2700 = vlaneseq
    %v2701 = vshrl.u32 %v2700, 7
    %v2702 = vsub.s32 0, %v2701
    %v2703 = vrot.slane %v56, %v2702
    %v2704 = vlaneseq
    %v2705 = vshrl.u32 %v2704, 7
    %v2706 = vsub.s32 1, %v2705
    %v2707 = vrot.slane %v56, %v2706
    %v2708 = vlaneseq
    %v2709 = vshrl.u32 %v2708, 7
    %v2710 = vsub.s32 2, %v2709
    %v2711 = vrot.slane %v56, %v2710
    %v2712 = vlaneseq
    %v2713 = vshrl.u32 %v2712, 7
    %v2714 = vsub.s32 3, %v2713
    %v2715 = vrot.slane %v56, %v2714
    %v2720 = vadd.f32 %v2695, %v2703
    %v2721 = vadd.f32 %v2696, %v2707
    %v2722 = vadd.f32 %v2697, %v2711
    %v2723 = vadd.f32 %v2698, %v2715
    %v2724 = vmul.f32 %v2720, 0.2
    %v2725 = vmul.f32 %v2721, 0.2
    %v2726 = vmul.f32 %v2722, 0.2
    %v2727 = vmul.f32 %v2723, 0.2
    %v2728 = vmax.f32 %v2720, %v2724
    %v2729 = vmax.f32 %v2721, %v2725
    %v2730 = vmax.f32 %v2722, %v2726
    %v2731 = vmax.f32 %v2723, %v2727
    %v2732 = vpack.c.bf16 %v2728, %v2728
    %v2733 = vpack.c.bf16 %v2729, %v2729
    %v2734 = vpack.c.bf16 %v2730, %v2730
    %v2735 = vpack.c.bf16 %v2731, %v2731
    %v2736 = vld [vmem:[%s4] sm:$0xf]
    %v2737 = vld [vmem:[%s4 + $0x4] sm:$0xf]
    %v2738 = vld [vmem:[%s4 + $0x8] sm:$0xf]
    %v2739 = vld [vmem:[%s4 + $0xc] sm:$0xf]
    %v2740 = vld [vmem:[%s4 + $0x10] sm:$0xf]
    %v2741 = vld [vmem:[%s4 + $0x14] sm:$0xf]
    %v2742 = vld [vmem:[%s4 + $0x18] sm:$0xf]
    %v2743 = vld [vmem:[%s4 + $0x1c] sm:$0xf]
    %v2744 = vld [vmem:[%s4 + $0x20] sm:$0xf]
    %v2745 = vld [vmem:[%s4 + $0x24] sm:$0xf]
    %v2746 = vld [vmem:[%s4 + $0x28] sm:$0xf]
    %v2747 = vld [vmem:[%s4 + $0x2c] sm:$0xf]
    %v2748 = vld [vmem:[%s4 + $0x30] sm:$0xf]
    %v2749 = vld [vmem:[%s4 + $0x34] sm:$0xf]
    %v2750 = vld [vmem:[%s4 + $0x38] sm:$0xf]
    %v2751 = vld [vmem:[%s4 + $0x3c] sm:$0xf]
    %v2752 = vld [vmem:[%s4 + $0x40] sm:$0xf]
    %v2753 = vld [vmem:[%s4 + $0x44] sm:$0xf]
    %v2754 = vld [vmem:[%s4 + $0x48] sm:$0xf]
    %v2755 = vld [vmem:[%s4 + $0x4c] sm:$0xf]
    %v2756 = vld [vmem:[%s4 + $0x50] sm:$0xf]
    %v2757 = vld [vmem:[%s4 + $0x54] sm:$0xf]
    %v2758 = vld [vmem:[%s4 + $0x58] sm:$0xf]
    %v2759 = vld [vmem:[%s4 + $0x5c] sm:$0xf]
    %v2760 = vld [vmem:[%s4 + $0x60] sm:$0xf]
    %v2761 = vld [vmem:[%s4 + $0x64] sm:$0xf]
    %v2762 = vld [vmem:[%s4 + $0x68] sm:$0xf]
    %v2763 = vld [vmem:[%s4 + $0x6c] sm:$0xf]
    %v2764 = vld [vmem:[%s4 + $0x70] sm:$0xf]
    %v2765 = vld [vmem:[%s4 + $0x74] sm:$0xf]
    %v2766 = vld [vmem:[%s4 + $0x78] sm:$0xf]
    %v2767 = vld [vmem:[%s4 + $0x7c] sm:$0xf]
    %v2768 = vld [vmem:[%s4 + $0x80] sm:$0xf]
    %v2769 = vld [vmem:[%s4 + $0x84] sm:$0xf]
    %v2770 = vld [vmem:[%s4 + $0x88] sm:$0xf]
    %v2771 = vld [vmem:[%s4 + $0x8c] sm:$0xf]
    %v2772 = vld [vmem:[%s4 + $0x90] sm:$0xf]
    %v2773 = vld [vmem:[%s4 + $0x94] sm:$0xf]
    %v2774 = vld [vmem:[%s4 + $0x98] sm:$0xf]
    %v2775 = vld [vmem:[%s4 + $0x9c] sm:$0xf]
    %v2776 = vld [vmem:[%s4 + $0xa0] sm:$0xf]
    %v2777 = vld [vmem:[%s4 + $0xa4] sm:$0xf]
    %v2778 = vld [vmem:[%s4 + $0xa8] sm:$0xf]
    %v2779 = vld [vmem:[%s4 + $0xac] sm:$0xf]
    %v2780 = vld [vmem:[%s4 + $0xb0] sm:$0xf]
    %v2781 = vld [vmem:[%s4 + $0xb4] sm:$0xf]
    %v2782 = vld [vmem:[%s4 + $0xb8] sm:$0xf]
    %v2783 = vld [vmem:[%s4 + $0xbc] sm:$0xf]
    %v2784 = vld [vmem:[%s4 + $0xc0] sm:$0xf]
    %v2785 = vld [vmem:[%s4 + $0xc4] sm:$0xf]
    %v2786 = vld [vmem:[%s4 + $0xc8] sm:$0xf]
    %v2787 = vld [vmem:[%s4 + $0xcc] sm:$0xf]
    %v2788 = vld [vmem:[%s4 + $0xd0] sm:$0xf]
    %v2789 = vld [vmem:[%s4 + $0xd4] sm:$0xf]
    %v2790 = vld [vmem:[%s4 + $0xd8] sm:$0xf]
    %v2791 = vld [vmem:[%s4 + $0xdc] sm:$0xf]
    %v2792 = vld [vmem:[%s4 + $0xe0] sm:$0xf]
    %v2793 = vld [vmem:[%s4 + $0xe4] sm:$0xf]
    %v2794 = vld [vmem:[%s4 + $0xe8] sm:$0xf]
    %v2795 = vld [vmem:[%s4 + $0xec] sm:$0xf]
    %v2796 = vld [vmem:[%s4 + $0xf0] sm:$0xf]
    %v2797 = vld [vmem:[%s4 + $0xf4] sm:$0xf]
    %v2798 = vld [vmem:[%s4 + $0xf8] sm:$0xf]
    %v2799 = vld [vmem:[%s4 + $0xfc] sm:$0xf]
    %v2800 = vlaneseq
    %v2801 = vshrl.u32 %v2800, 7
    %v2802 = vsub.s32 0, %v2801
    %v2803 = vrot.slane %v57, %v2802
    %v2868 = vunpack.c.l.b16 %v2736
    %v2869 = vunpack.c.l.b16 %v2737
    %v2870 = vunpack.c.l.b16 %v2738
    %v2871 = vunpack.c.l.b16 %v2739
    %v2872 = vunpack.c.l.b16 %v2740
    %v2873 = vunpack.c.l.b16 %v2741
    %v2874 = vunpack.c.l.b16 %v2742
    %v2875 = vunpack.c.l.b16 %v2743
    %v2876 = vunpack.c.l.b16 %v2744
    %v2877 = vunpack.c.l.b16 %v2745
    %v2878 = vunpack.c.l.b16 %v2746
    %v2879 = vunpack.c.l.b16 %v2747
    %v2880 = vunpack.c.l.b16 %v2748
    %v2881 = vunpack.c.l.b16 %v2749
    %v2882 = vunpack.c.l.b16 %v2750
    %v2883 = vunpack.c.l.b16 %v2751
    %v2884 = vunpack.c.l.b16 %v2752
    %v2885 = vunpack.c.l.b16 %v2753
    %v2886 = vunpack.c.l.b16 %v2754
    %v2887 = vunpack.c.l.b16 %v2755
    %v2888 = vunpack.c.l.b16 %v2756
    %v2889 = vunpack.c.l.b16 %v2757
    %v2890 = vunpack.c.l.b16 %v2758
    %v2891 = vunpack.c.l.b16 %v2759
    %v2892 = vunpack.c.l.b16 %v2760
    %v2893 = vunpack.c.l.b16 %v2761
    %v2894 = vunpack.c.l.b16 %v2762
    %v2895 = vunpack.c.l.b16 %v2763
    %v2896 = vunpack.c.l.b16 %v2764
    %v2897 = vunpack.c.l.b16 %v2765
    %v2898 = vunpack.c.l.b16 %v2766
    %v2899 = vunpack.c.l.b16 %v2767
    %v2900 = vunpack.c.l.b16 %v2768
    %v2901 = vunpack.c.l.b16 %v2769
    %v2902 = vunpack.c.l.b16 %v2770
    %v2903 = vunpack.c.l.b16 %v2771
    %v2904 = vunpack.c.l.b16 %v2772
    %v2905 = vunpack.c.l.b16 %v2773
    %v2906 = vunpack.c.l.b16 %v2774
    %v2907 = vunpack.c.l.b16 %v2775
    %v2908 = vunpack.c.l.b16 %v2776
    %v2909 = vunpack.c.l.b16 %v2777
    %v2910 = vunpack.c.l.b16 %v2778
    %v2911 = vunpack.c.l.b16 %v2779
    %v2912 = vunpack.c.l.b16 %v2780
    %v2913 = vunpack.c.l.b16 %v2781
    %v2914 = vunpack.c.l.b16 %v2782
    %v2915 = vunpack.c.l.b16 %v2783
    %v2916 = vunpack.c.l.b16 %v2784
    %v2917 = vunpack.c.l.b16 %v2785
    %v2918 = vunpack.c.l.b16 %v2786
    %v2919 = vunpack.c.l.b16 %v2787
    %v2920 = vunpack.c.l.b16 %v2788
    %v2921 = vunpack.c.l.b16 %v2789
    %v2922 = vunpack.c.l.b16 %v2790
    %v2923 = vunpack.c.l.b16 %v2791
    %v2924 = vunpack.c.l.b16 %v2792
    %v2925 = vunpack.c.l.b16 %v2793
    %v2926 = vunpack.c.l.b16 %v2794
    %v2927 = vunpack.c.l.b16 %v2795
    %v2928 = vunpack.c.l.b16 %v2796
    %v2929 = vunpack.c.l.b16 %v2797
    %v2930 = vunpack.c.l.b16 %v2798
    %v2931 = vunpack.c.l.b16 %v2799
    %v2932 = vpack.c.b16 %v2869, %v2868
    %v2933 = vpack.c.b16 %v2871, %v2870
    %v2934 = vpack.c.b16 %v2873, %v2872
    %v2935 = vpack.c.b16 %v2875, %v2874
    %v2936 = vpack.c.b16 %v2877, %v2876
    %v2937 = vpack.c.b16 %v2879, %v2878
    %v2938 = vpack.c.b16 %v2881, %v2880
    %v2939 = vpack.c.b16 %v2883, %v2882
    %v2940 = vpack.c.b16 %v2885, %v2884
    %v2941 = vpack.c.b16 %v2887, %v2886
    %v2942 = vpack.c.b16 %v2889, %v2888
    %v2943 = vpack.c.b16 %v2891, %v2890
    %v2944 = vpack.c.b16 %v2893, %v2892
    %v2945 = vpack.c.b16 %v2895, %v2894
    %v2946 = vpack.c.b16 %v2897, %v2896
    %v2947 = vpack.c.b16 %v2899, %v2898
    %v2948 = vpack.c.b16 %v2901, %v2900
    %v2949 = vpack.c.b16 %v2903, %v2902
    %v2950 = vpack.c.b16 %v2905, %v2904
    %v2951 = vpack.c.b16 %v2907, %v2906
    %v2952 = vpack.c.b16 %v2909, %v2908
    %v2953 = vpack.c.b16 %v2911, %v2910
    %v2954 = vpack.c.b16 %v2913, %v2912
    %v2955 = vpack.c.b16 %v2915, %v2914
    %v2956 = vpack.c.b16 %v2917, %v2916
    %v2957 = vpack.c.b16 %v2919, %v2918
    %v2958 = vpack.c.b16 %v2921, %v2920
    %v2959 = vpack.c.b16 %v2923, %v2922
    %v2960 = vpack.c.b16 %v2925, %v2924
    %v2961 = vpack.c.b16 %v2927, %v2926
    %v2962 = vpack.c.b16 %v2929, %v2928
    %v2963 = vpack.c.b16 %v2931, %v2930
    %2996 = vmatprep.subr.bf16.mxu0 0
    %2997 = vmatpush1.bf16.msra.mxu0 %v2939
    %2998 = vmatprep.subr.bf16.mxu0 0
    %2999 = vmatpush1.bf16.msra.mxu0 %v2938
    %3000 = vmatprep.subr.bf16.mxu0 0
    %3001 = vmatpush1.bf16.msra.mxu0 %v2937
    %3002 = vmatprep.subr.bf16.mxu0 0
    %3003 = vmatpush1.bf16.msra.mxu0 %v2936
    %3004 = vmatprep.subr.bf16.mxu0 0
    %3005 = vmatpush1.bf16.msra.mxu0 %v2935
    %3006 = vmatprep.subr.bf16.mxu0 0
    %3007 = vmatpush1.bf16.msra.mxu0 %v2934
    %3008 = vmatprep.subr.bf16.mxu0 0
    %3009 = vmatpush1.bf16.msra.mxu0 %v2933
    %3010 = vmatprep.subr.bf16.mxu0 0
    %3011 = vmatpush1.bf16.msra.mxu0 %v2932
    %3012 = vmatprep.subr.bf16.mxu0 0
    %3013 = vmatpush2.bf16.msra.mxu0 %v2947
    %3014 = vmatprep.subr.bf16.mxu0 0
    %3015 = vmatpush2.bf16.msra.mxu0 %v2946
    %3016 = vmatprep.subr.bf16.mxu0 0
    %3017 = vmatpush2.bf16.msra.mxu0 %v2945
    %3018 = vmatprep.subr.bf16.mxu0 0
    %3019 = vmatpush2.bf16.msra.mxu0 %v2944
    %3020 = vmatprep.subr.bf16.mxu0 0
    %3021 = vmatpush2.bf16.msra.mxu0 %v2943
    %3022 = vmatprep.subr.bf16.mxu0 0
    %3023 = vmatpush2.bf16.msra.mxu0 %v2942
    %3024 = vmatprep.subr.bf16.mxu0 0
    %3025 = vmatpush2.bf16.msra.mxu0 %v2941
    %3026 = vmatprep.subr.bf16.mxu0 0
    %3027 = vmatpush2.bf16.msra.mxu0 %v2940
    %3028 = vmatprep.mubr.bf16.mxu0 %v2733
    %3029 = vmatmul.mubr.bf16.gmra.mxu0 %v2732
    %v3030 = vpop.f32.mrf.mxu0
    %v3031 = vadd.f32 %v2803, %v3030
    %v3032 = vpop.f32.mrf.mxu0
    %v3033 = vpop.f32.mrf.mxu0
    %v3034 = vpop.f32.mrf.mxu0
    %3035 = vdwg.mxu0
    %3036 = vmatprep.subr.bf16.mxu0 0
    %3037 = vmatpush1.bf16.msra.mxu0 %v2955
    %3038 = vmatprep.subr.bf16.mxu0 0
    %3039 = vmatpush1.bf16.msra.mxu0 %v2954
    %3040 = vmatprep.subr.bf16.mxu0 0
    %3041 = vmatpush1.bf16.msra.mxu0 %v2953
    %3042 = vmatprep.subr.bf16.mxu0 0
    %3043 = vmatpush1.bf16.msra.mxu0 %v2952
    %3044 = vmatprep.subr.bf16.mxu0 0
    %3045 = vmatpush1.bf16.msra.mxu0 %v2951
    %3046 = vmatprep.subr.bf16.mxu0 0
    %3047 = vmatpush1.bf16.msra.mxu0 %v2950
    %3048 = vmatprep.subr.bf16.mxu0 0
    %3049 = vmatpush1.bf16.msra.mxu0 %v2949
    %3050 = vmatprep.subr.bf16.mxu0 0
    %3051 = vmatpush1.bf16.msra.mxu0 %v2948
    %3052 = vmatprep.subr.bf16.mxu0 0
    %3053 = vmatpush2.bf16.msra.mxu0 %v2963
    %3054 = vmatprep.subr.bf16.mxu0 0
    %3055 = vmatpush2.bf16.msra.mxu0 %v2962
    %3056 = vmatprep.subr.bf16.mxu0 0
    %3057 = vmatpush2.bf16.msra.mxu0 %v2961
    %3058 = vmatprep.subr.bf16.mxu0 0
    %3059 = vmatpush2.bf16.msra.mxu0 %v2960
    %3060 = vmatprep.subr.bf16.mxu0 0
    %3061 = vmatpush2.bf16.msra.mxu0 %v2959
    %3062 = vmatprep.subr.bf16.mxu0 0
    %3063 = vmatpush2.bf16.msra.mxu0 %v2958
    %3064 = vmatprep.subr.bf16.mxu0 0
    %3065 = vmatpush2.bf16.msra.mxu0 %v2957
    %3066 = vmatprep.subr.bf16.mxu0 0
    %3067 = vmatpush2.bf16.msra.mxu0 %v2956
    %3068 = vmatprep.mubr.bf16.mxu0 %v2735
    %3069 = vmatmul.mubr.bf16.gmra.mxu0 %v2734
    %v3070 = vpop.f32.mrf.mxu0
    %v3071 = vadd.f32 %v3031, %v3070
    %v3072 = vpop.f32.mrf.mxu0
    %v3073 = vpop.f32.mrf.mxu0
    %v3074 = vpop.f32.mrf.mxu0
    %3075 = vdwg.mxu0
    %v3076 = vld [vmem:[%s1] sm:$0xff]
    %v3077 = vmul.f32 %v3071, 0.5
    %v3078 = vmul.f32 %v3077, 1.442695
    %v3079 = vpow.pop %v3078
    %3081 = vrot.lane.b32.xlu0 %v3079, 118
    %v3082 = vpop.permute.xlu0 %3081
    %v3084 = vmul.f32 %v3076, %v3082
    %v3085 = vadd.f32 %v3084, %v3071
    %3087 = vrot.lane.b32.xlu0 %v3071, 10
    %v3088 = vpop.permute.xlu0 %3087
    %vm3090 = vcmask 80896
    %v3091 = vsel %vm3090, %v3085, %v3088
    %vm3092 = vcmask 162816
    %v3093 = vsel %vm3092, %v3091, %v3088
    %vm3094 = vcmask 244736
    %v3095 = vsel %vm3094, %v3093, 0.0
    %3096 = vst [vmem:[%s6] sm:$0xff] %v3095
    // Predicated region
    $region34: #{_encoder_forward_impl.1} parent=1 // pred_check
      _
    $region35: #{_encoder_forward_impl.1} parent=1 // pred_check_branch
      %3098 = sbr.rel (0) target = $region37
    $region36: #{_encoder_forward_impl.1} parent=1 // pred_region
      _
    $region37: #{_encoder_forward_impl.1} parent=1 // pred_fallthru
      _
    // Predicated region
    $region38: #{_encoder_forward_impl.1} parent=1 // pred_check
      _
    $region39: #{_encoder_forward_impl.1} parent=1 // pred_check_branch
      %3100 = sbr.rel (0) target = $region41
    $region40: #{_encoder_forward_impl.1} parent=1 // pred_region
      _
    $region41: #{_encoder_forward_impl.1} parent=1 // pred_fallthru
      _
    %3101 = vsyncpa [#allocation3], 1
    %3102 = vsyncpa [#allocation5], 1

</llo_original>
